<compile_context>
chip_gen: v6e
topology: v6e:2x2x1
jax: 0.10.0
libtpu: 0.0.40
codegen_flags: <defaults>
</compile_context>

<pallas_src>
import functools

import jax
import jax.numpy as jnp
from jax.experimental import pallas as pl
from jax.experimental.pallas import tpu as pltpu  # noqa: F401  (kept for parity)


# Layer order inside the packed slabs: (weight_key, bias_key or None).
# g1a/g1b are the column-split of guidance_processor's first Linear
# ([latent | frame_emb]); gb1 rides with g1a, g1b gets zero bias rows.
_LAYERS = (('w1', 'b1'), ('w2', 'b2'), ('w3', 'b3'), ('wg', 'bg'),
           ('a1', 'c1'), ('a2', 'c2'), ('g1a', 'gb1'), ('g1b', None),
           ('g2', 'gb2'))


# ---------------------------------------------------------------------------
# Pallas kernel: full forward pass for the whole batch in one invocation.
# Channel-major everywhere: weights (C_out, C_in) carved from one slab,
# biases (C_out, 1) carved from one slab, activations (C_out, M) with the
# flattened point/batch axis in lanes.
# ---------------------------------------------------------------------------
def _guidance_kernel(pts_ref, femb_ref, w_ref, b_ref, out_ref, *, layout, B, N):
    def lin(name, x, relu):
        off, c_out, c_in = layout[name]
        w = w_ref[off:off + c_out, 0:c_in]        # static slice into weight slab
        b = b_ref[off:off + c_out, :]             # (c_out, 1)
        y = jnp.dot(w, x, preferred_element_type=jnp.float32) + b
        return jnp.maximum(y, 0.0) if relu else y

    # --- encoder_blocks + global_feat: one pass over (C_in, B*N) -------------
    x = pts_ref[...]                               # (C_in, B*N), lane-dense
    h = lin('w1', x, True)                         # (H/4, B*N)
    h = lin('w2', h, True)                         # (H/2, B*N)
    h = lin('w3', h, True)                         # (H,   B*N)
    g = lin('wg', h, True)                         # (H,   B*N)

    # --- max-pool over points: reshape lanes (B*N) -> (B, N), reduce N -------
    H = g.shape[0]
    gmax = jnp.max(g.reshape(H, B, N), axis=-1)    # (H, B)

    # --- batched tail: to_latent + guidance_processor for all B at once ------
    l = lin('a1', gmax, True)                      # (L, B)
    latent = lin('a2', l, False)                   # (L, B)
    hc = lin('g1a', latent, False) + lin('g1b', femb_ref[...], False)
    hc = jnp.maximum(hc, 0.0)                      # (L, B)
    out_ref[...] = lin('g2', hc, False)            # (L, B)


# ---------------------------------------------------------------------------
# Parameter packing (done once): two slabs + static layout table.
# ---------------------------------------------------------------------------
def pack_params(params):
    max_cin = max(params[wk].shape[1] for wk, _ in _LAYERS)
    w_rows, b_rows, layout, off = [], [], [], 0
    for wk, bk in _LAYERS:
        W = jnp.asarray(params[wk], jnp.float32)
        c_out, c_in = W.shape
        layout.append((wk, off, c_out, c_in))
        w_rows.append(jnp.pad(W, ((0, 0), (0, max_cin - c_in))))
        if bk is None:
            b_rows.append(jnp.zeros((c_out, 1), jnp.float32))
        else:
            b_rows.append(jnp.asarray(params[bk], jnp.float32))
        off += c_out
    return {
        'w_slab': jnp.concatenate(w_rows, axis=0),     # (sum C_out, max C_in)
        'b_slab': jnp.concatenate(b_rows, axis=0),     # (sum C_out, 1)
        'emb_table': jnp.asarray(params['emb_table'], jnp.float32),
        'layout': tuple(layout),                       # hashable -> static arg
    }


# ---------------------------------------------------------------------------
# Jitted wrapper: gather/flatten/transpose fuse with the single pallas_call.
# ---------------------------------------------------------------------------
@functools.partial(jax.jit, static_argnums=(5,))
def _forward_jit(points_ncw, frame_num, emb_table, w_slab, b_slab, layout_t):
    layout = {name: (off, co, ci) for name, off, co, ci in layout_t}
    B, c_in, N = points_ncw.shape
    L = layout['g2'][1]

    # (B, C_in, N) -> (C_in, B*N): batch flattened into the lane axis.
    pts_flat = jnp.transpose(points_ncw.astype(jnp.float32),
                             (1, 0, 2)).reshape(c_in, B * N)
    femb = emb_table[frame_num].astype(jnp.float32).T            # (L//4, B)

    kernel = functools.partial(_guidance_kernel, layout=layout, B=B, N=N)
    out_lb = pl.pallas_call(
        kernel,
        out_shape=jax.ShapeDtypeStruct((L, B), jnp.float32),
    )(pts_flat, femb, w_slab, b_slab)
    return out_lb.T                                              # (B, L), fused


def guidance_encoder_forward(points_ncw, frame_num, packed):
    """points_ncw: (B, C_in, N) f32, frame_num: (B,) int32 -> (B, L) f32."""
    return _forward_jit(points_ncw, frame_num, packed['emb_table'],
                        packed['w_slab'], packed['b_slab'], packed['layout'])


# ---------------------------------------------------------------------------
# Deterministic parameter construction (eval-mode BN folded, channel-major).
# ---------------------------------------------------------------------------
def _conv_bn_fold(key, c_in, c_out, eps=1e-5):
    kw, kb, kg, kbe, km, kv = jax.random.split(key, 6)
    W = 0.1 * jax.random.normal(kw, (c_out, c_in), jnp.float32)
    b = 0.1 * jax.random.normal(kb, (c_out,), jnp.float32)
    gamma = 1.0 + 0.1 * jax.random.normal(kg, (c_out,), jnp.float32)
    beta = 0.1 * jax.random.normal(kbe, (c_out,), jnp.float32)
    mean = 0.1 * jax.random.normal(km, (c_out,), jnp.float32)
    var = 1.0 + 0.1 * jnp.abs(jax.random.normal(kv, (c_out,), jnp.float32))
    scale = gamma / jnp.sqrt(var + eps)
    return W * scale[:, None], ((b - mean) * scale + beta)[:, None]


def _linear(key, c_in, c_out):
    kw, kb = jax.random.split(key)
    W = 0.1 * jax.random.normal(kw, (c_out, c_in), jnp.float32)
    b = 0.1 * jax.random.normal(kb, (c_out,), jnp.float32)
    return W, b[:, None]


def init_params(key, in_channels=3, hidden_dim=32, latent_dim=32, max_frames=200):
    ks = jax.random.split(key, 9)
    p = {}
    p['w1'], p['b1'] = _conv_bn_fold(ks[0], in_channels, hidden_dim // 4)
    p['w2'], p['b2'] = _conv_bn_fold(ks[1], hidden_dim // 4, hidden_dim // 2)
    p['w3'], p['b3'] = _conv_bn_fold(ks[2], hidden_dim // 2, hidden_dim)
    p['wg'], p['bg'] = _conv_bn_fold(ks[3], hidden_dim, hidden_dim)
    p['a1'], p['c1'] = _linear(ks[4], hidden_dim, latent_dim)
    p['a2'], p['c2'] = _linear(ks[5], latent_dim, latent_dim)
    # guidance_processor first Linear split column-wise into [latent | frame_emb].
    g1, gb1 = _linear(ks[6], latent_dim + latent_dim // 4, latent_dim)
    p['g1a'], p['g1b'], p['gb1'] = g1[:, :latent_dim], g1[:, latent_dim:], gb1
    p['g2'], p['gb2'] = _linear(ks[7], latent_dim, latent_dim)
    p['emb_table'] = 0.1 * jax.random.normal(
        ks[8], (max_frames, latent_dim // 4), jnp.float32)
    return p


# ---------------------------------------------------------------------------
# Pure-JAX reference (same math) for a correctness sanity check.
# ---------------------------------------------------------------------------
def ref_forward(points_ncw, frame_num, p):
    relu = jax.nn.relu

    def block(x, W, b):                                  # W (Co,Ci), b (Co,1)
        return relu(jnp.einsum('oc,bcn->bon', W, x) + b[None, :, :])

    h = block(points_ncw, p['w1'], p['b1'])
    h = block(h, p['w2'], p['b2'])
    h = block(h, p['w3'], p['b3'])
    g = block(h, p['wg'], p['bg'])
    gmax = jnp.max(g, axis=2)                            # (B, H) max over points
    latent = relu(gmax @ p['a1'].T + p['c1'].T) @ p['a2'].T + p['c2'].T
    femb = p['emb_table'][frame_num]                     # (B, L//4)
    comb = jnp.concatenate([latent, femb], axis=1)
    g1 = jnp.concatenate([p['g1a'], p['g1b']], axis=1)   # (L, L + L//4)
    h2 = relu(comb @ g1.T + p['gb1'].T)
    return h2 @ p['g2'].T + p['gb2'].T


if __name__ == "__main__":
    key = jax.random.PRNGKey(0)
    k_pts, k_frm, k_par = jax.random.split(key, 3)

    B, C_IN, N = 2, 3, 128        # (batch, xyz, num_points)
    HIDDEN, LATENT, MAX_FRAMES = 32, 32, 200

    points = jax.random.normal(k_pts, (B, C_IN, N), jnp.float32)   # (B, 3, N)
    frame_num = jax.random.randint(k_frm, (B,), 0, MAX_FRAMES)     # (B,)
    params = init_params(k_par, C_IN, HIDDEN, LATENT, MAX_FRAMES)
    packed = pack_params(params)

    out = guidance_encoder_forward(points, frame_num, packed)
    out = jax.block_until_ready(out)

    ref = ref_forward(points, frame_num, params)
    assert out.shape == (B, LATENT)
    assert jnp.allclose(out, ref, atol=1e-4, rtol=1e-4), "mismatch vs JAX reference"

    print("KERNEL_OK")
</pallas_src>

<mosaic_0001>
module attributes {stable_mosaic.version = 11 : i64} {
  func.func @_guidance_kernel(%arg0: memref<3x256xf32, #tpu.memory_space<vmem>>, %arg1: memref<8x2xf32, #tpu.memory_space<vmem>>, %arg2: memref<248x32xf32, #tpu.memory_space<vmem>>, %arg3: memref<248x1xf32, #tpu.memory_space<vmem>>, %arg4: memref<32x2xf32, #tpu.memory_space<vmem>>) attributes {dimension_semantics = [], scalar_prefetch = 0 : i64, scratch_operands = 0 : i64, tpu.core_type = #tpu.core_type<tc>} {
    %c0 = arith.constant 0 : index
    %c0_0 = arith.constant 0 : index
    %0 = vector.load %arg0[%c0, %c0_0] : memref<3x256xf32, #tpu.memory_space<vmem>>, vector<3x256xf32>
    %c0_1 = arith.constant 0 : index
    %c0_2 = arith.constant 0 : index
    %1 = vector.load %arg2[%c0_1, %c0_2] : memref<248x32xf32, #tpu.memory_space<vmem>>, vector<8x3xf32>
    %c0_3 = arith.constant 0 : index
    %c0_4 = arith.constant 0 : index
    %2 = vector.load %arg3[%c0_3, %c0_4] : memref<248x1xf32, #tpu.memory_space<vmem>>, vector<8x1xf32>
    %cst = arith.constant dense<0.000000e+00> : vector<8x256xf32>
    %3 = tpu.matmul %1, %0, %cst {dimension_numbers = #tpu.dot_dimension_numbers<[1], [0], [0], [1], [0, 0, 1, 1], [], []>} : vector<8x3xf32>, vector<3x256xf32>, vector<8x256xf32> -> vector<8x256xf32>
    %4 = vector.broadcast %2 : vector<8x1xf32> to vector<8x256xf32>
    %5 = arith.addf %3, %4 : vector<8x256xf32>
    %cst_5 = arith.constant 0.000000e+00 : f32
    %6 = vector.broadcast %cst_5 : f32 to vector<8x256xf32>
    %7 = arith.maximumf %5, %6 : vector<8x256xf32>
    %c8 = arith.constant 8 : index
    %c0_6 = arith.constant 0 : index
    %8 = vector.load %arg2[%c8, %c0_6] : memref<248x32xf32, #tpu.memory_space<vmem>>, vector<16x8xf32>
    %c8_7 = arith.constant 8 : index
    %c0_8 = arith.constant 0 : index
    %9 = vector.load %arg3[%c8_7, %c0_8] : memref<248x1xf32, #tpu.memory_space<vmem>>, vector<16x1xf32>
    %cst_9 = arith.constant dense<0.000000e+00> : vector<16x256xf32>
    %10 = tpu.matmul %8, %7, %cst_9 {dimension_numbers = #tpu.dot_dimension_numbers<[1], [0], [0], [1], [0, 0, 1, 1], [], []>} : vector<16x8xf32>, vector<8x256xf32>, vector<16x256xf32> -> vector<16x256xf32>
    %11 = vector.broadcast %9 : vector<16x1xf32> to vector<16x256xf32>
    %12 = arith.addf %10, %11 : vector<16x256xf32>
    %cst_10 = arith.constant 0.000000e+00 : f32
    %13 = vector.broadcast %cst_10 : f32 to vector<16x256xf32>
    %14 = arith.maximumf %12, %13 : vector<16x256xf32>
    %c24 = arith.constant 24 : index
    %c0_11 = arith.constant 0 : index
    %15 = vector.load %arg2[%c24, %c0_11] : memref<248x32xf32, #tpu.memory_space<vmem>>, vector<32x16xf32>
    %c24_12 = arith.constant 24 : index
    %c0_13 = arith.constant 0 : index
    %16 = vector.load %arg3[%c24_12, %c0_13] : memref<248x1xf32, #tpu.memory_space<vmem>>, vector<32x1xf32>
    %cst_14 = arith.constant dense<0.000000e+00> : vector<32x256xf32>
    %17 = tpu.matmul %15, %14, %cst_14 {dimension_numbers = #tpu.dot_dimension_numbers<[1], [0], [0], [1], [0, 0, 1, 1], [], []>} : vector<32x16xf32>, vector<16x256xf32>, vector<32x256xf32> -> vector<32x256xf32>
    %18 = vector.broadcast %16 : vector<32x1xf32> to vector<32x256xf32>
    %19 = arith.addf %17, %18 : vector<32x256xf32>
    %cst_15 = arith.constant 0.000000e+00 : f32
    %20 = vector.broadcast %cst_15 : f32 to vector<32x256xf32>
    %21 = arith.maximumf %19, %20 : vector<32x256xf32>
    %c56 = arith.constant 56 : index
    %c0_16 = arith.constant 0 : index
    %22 = vector.load %arg2[%c56, %c0_16] : memref<248x32xf32, #tpu.memory_space<vmem>>, vector<32x32xf32>
    %c56_17 = arith.constant 56 : index
    %c0_18 = arith.constant 0 : index
    %23 = vector.load %arg3[%c56_17, %c0_18] : memref<248x1xf32, #tpu.memory_space<vmem>>, vector<32x1xf32>
    %cst_19 = arith.constant dense<0.000000e+00> : vector<32x256xf32>
    %24 = tpu.matmul %22, %21, %cst_19 {dimension_numbers = #tpu.dot_dimension_numbers<[1], [0], [0], [1], [0, 0, 1, 1], [], []>} : vector<32x32xf32>, vector<32x256xf32>, vector<32x256xf32> -> vector<32x256xf32>
    %25 = vector.broadcast %23 : vector<32x1xf32> to vector<32x256xf32>
    %26 = arith.addf %24, %25 : vector<32x256xf32>
    %cst_20 = arith.constant 0.000000e+00 : f32
    %27 = vector.broadcast %cst_20 : f32 to vector<32x256xf32>
    %28 = arith.maximumf %26, %27 : vector<32x256xf32>
    %29 = vector.shape_cast %28 : vector<32x256xf32> to vector<32x2x128xf32>
    %cst_21 = arith.constant dense<0xFF800000> : vector<32x2xf32>
    %30 = vector.multi_reduction <maximumf>, %29, %cst_21 [2] : vector<32x2x128xf32> to vector<32x2xf32>
    %c88 = arith.constant 88 : index
    %c0_22 = arith.constant 0 : index
    %31 = vector.load %arg2[%c88, %c0_22] : memref<248x32xf32, #tpu.memory_space<vmem>>, vector<32x32xf32>
    %c88_23 = arith.constant 88 : index
    %c0_24 = arith.constant 0 : index
    %32 = vector.load %arg3[%c88_23, %c0_24] : memref<248x1xf32, #tpu.memory_space<vmem>>, vector<32x1xf32>
    %cst_25 = arith.constant dense<0.000000e+00> : vector<32x2xf32>
    %33 = tpu.matmul %31, %30, %cst_25 {dimension_numbers = #tpu.dot_dimension_numbers<[1], [0], [0], [1], [0, 0, 1, 1], [], []>} : vector<32x32xf32>, vector<32x2xf32>, vector<32x2xf32> -> vector<32x2xf32>
    %34 = vector.broadcast %32 : vector<32x1xf32> to vector<32x2xf32>
    %35 = arith.addf %33, %34 : vector<32x2xf32>
    %cst_26 = arith.constant 0.000000e+00 : f32
    %36 = vector.broadcast %cst_26 : f32 to vector<32x2xf32>
    %37 = arith.maximumf %35, %36 : vector<32x2xf32>
    %c120 = arith.constant 120 : index
    %c0_27 = arith.constant 0 : index
    %38 = vector.load %arg2[%c120, %c0_27] : memref<248x32xf32, #tpu.memory_space<vmem>>, vector<32x32xf32>
    %c120_28 = arith.constant 120 : index
    %c0_29 = arith.constant 0 : index
    %39 = vector.load %arg3[%c120_28, %c0_29] : memref<248x1xf32, #tpu.memory_space<vmem>>, vector<32x1xf32>
    %cst_30 = arith.constant dense<0.000000e+00> : vector<32x2xf32>
    %40 = tpu.matmul %38, %37, %cst_30 {dimension_numbers = #tpu.dot_dimension_numbers<[1], [0], [0], [1], [0, 0, 1, 1], [], []>} : vector<32x32xf32>, vector<32x2xf32>, vector<32x2xf32> -> vector<32x2xf32>
    %41 = vector.broadcast %39 : vector<32x1xf32> to vector<32x2xf32>
    %42 = arith.addf %40, %41 : vector<32x2xf32>
    %c152 = arith.constant 152 : index
    %c0_31 = arith.constant 0 : index
    %43 = vector.load %arg2[%c152, %c0_31] : memref<248x32xf32, #tpu.memory_space<vmem>>, vector<32x32xf32>
    %c152_32 = arith.constant 152 : index
    %c0_33 = arith.constant 0 : index
    %44 = vector.load %arg3[%c152_32, %c0_33] : memref<248x1xf32, #tpu.memory_space<vmem>>, vector<32x1xf32>
    %cst_34 = arith.constant dense<0.000000e+00> : vector<32x2xf32>
    %45 = tpu.matmul %43, %42, %cst_34 {dimension_numbers = #tpu.dot_dimension_numbers<[1], [0], [0], [1], [0, 0, 1, 1], [], []>} : vector<32x32xf32>, vector<32x2xf32>, vector<32x2xf32> -> vector<32x2xf32>
    %46 = vector.broadcast %44 : vector<32x1xf32> to vector<32x2xf32>
    %47 = arith.addf %45, %46 : vector<32x2xf32>
    %c0_35 = arith.constant 0 : index
    %c0_36 = arith.constant 0 : index
    %48 = vector.load %arg1[%c0_35, %c0_36] : memref<8x2xf32, #tpu.memory_space<vmem>>, vector<8x2xf32>
    %c184 = arith.constant 184 : index
    %c0_37 = arith.constant 0 : index
    %49 = vector.load %arg2[%c184, %c0_37] : memref<248x32xf32, #tpu.memory_space<vmem>>, vector<32x8xf32>
    %c184_38 = arith.constant 184 : index
    %c0_39 = arith.constant 0 : index
    %50 = vector.load %arg3[%c184_38, %c0_39] : memref<248x1xf32, #tpu.memory_space<vmem>>, vector<32x1xf32>
    %cst_40 = arith.constant dense<0.000000e+00> : vector<32x2xf32>
    %51 = tpu.matmul %49, %48, %cst_40 {dimension_numbers = #tpu.dot_dimension_numbers<[1], [0], [0], [1], [0, 0, 1, 1], [], []>} : vector<32x8xf32>, vector<8x2xf32>, vector<32x2xf32> -> vector<32x2xf32>
    %52 = vector.broadcast %50 : vector<32x1xf32> to vector<32x2xf32>
    %53 = arith.addf %51, %52 : vector<32x2xf32>
    %54 = arith.addf %47, %53 : vector<32x2xf32>
    %cst_41 = arith.constant 0.000000e+00 : f32
    %55 = vector.broadcast %cst_41 : f32 to vector<32x2xf32>
    %56 = arith.maximumf %54, %55 : vector<32x2xf32>
    %c216 = arith.constant 216 : index
    %c0_42 = arith.constant 0 : index
    %57 = vector.load %arg2[%c216, %c0_42] : memref<248x32xf32, #tpu.memory_space<vmem>>, vector<32x32xf32>
    %c216_43 = arith.constant 216 : index
    %c0_44 = arith.constant 0 : index
    %58 = vector.load %arg3[%c216_43, %c0_44] : memref<248x1xf32, #tpu.memory_space<vmem>>, vector<32x1xf32>
    %cst_45 = arith.constant dense<0.000000e+00> : vector<32x2xf32>
    %59 = tpu.matmul %57, %56, %cst_45 {dimension_numbers = #tpu.dot_dimension_numbers<[1], [0], [0], [1], [0, 0, 1, 1], [], []>} : vector<32x32xf32>, vector<32x2xf32>, vector<32x2xf32> -> vector<32x2xf32>
    %60 = vector.broadcast %58 : vector<32x1xf32> to vector<32x2xf32>
    %61 = arith.addf %59, %60 : vector<32x2xf32>
    %c0_46 = arith.constant 0 : index
    %c0_47 = arith.constant 0 : index
    %62 = vector.load %arg4[%c0_46, %c0_47] : memref<32x2xf32, #tpu.memory_space<vmem>>, vector<32x2xf32>
    tpu.vector_store %arg4[%c0_46, %c0_47], %61 {strides = array<i32>} : memref<32x2xf32, #tpu.memory_space<vmem>>, vector<32x2xf32>,
    return
  }
}

</mosaic_0001>

<llo_original>
// kernel: _forward_jit.1
$region0: #{_forward_jit.1}
  #allocation0 [shape = 'u32[]', space=smem, size = 0x4, offset = 0x4, fixed_abs, tag = 'smem constant byte address 0x4 - core index']
  #allocation1 [shape = 'u32[144,128]{1,0:T(1,128)}', space=vmem, size = 0x12000, scoped, tag = 'internal scratch']
  %s0 = inlined_call_operand.vmem [shape: f32[3,256], index: 0, kind: input, shape index: {}]
  %s1 = inlined_call_operand.vmem [shape: f32[8,2], index: 1, kind: input, shape index: {}]
  %s2 = inlined_call_operand.vmem [shape: f32[248,32], index: 2, kind: input, shape index: {}]
  %s3 = inlined_call_operand.vmem [shape: f32[248,1], index: 3, kind: input, shape index: {}]
  %s4 = inlined_call_operand.vmem [shape: f32[32,2], index: 4, kind: output, shape index: {}]
  %s5 = sld [smem:[#allocation0]]
  $region26: #{_forward_jit.1} parent=0
    _
  %s7 = ssub.s32 1, %s5
  %s8 = scalar_select 0, %s7, %s5
  // Predicated region
  $region2: #{_forward_jit.1} parent=0 // pred_check
    _
  $region3: #{_forward_jit.1} parent=0 // pred_check_branch
    %10 = sbr.rel (0) target = $region5
  $region4: #{_forward_jit.1} parent=0 // pred_region
    _
  $region5: #{_forward_jit.1} parent=0 // pred_fallthru
    _
  // Predicated region
  $region6: #{_forward_jit.1} parent=0 // pred_check
    _
  $region7: #{_forward_jit.1} parent=0 // pred_check_branch
    %12 = sbr.rel (0) target = $region9
  $region8: #{_forward_jit.1} parent=0 // pred_region
    _
  $region9: #{_forward_jit.1} parent=0 // pred_fallthru
    _
  // Predicated region
  $region10: #{_forward_jit.1} parent=0 // pred_check
    _
  $region11: #{_forward_jit.1} parent=0 // pred_check_branch
    %14 = sbr.rel (0) target = $region13
  $region12: #{_forward_jit.1} parent=0 // pred_region
    _
  $region13: #{_forward_jit.1} parent=0 // pred_fallthru
    _
  // Predicated region
  $region14: #{_forward_jit.1} parent=0 // pred_check
    _
  $region15: #{_forward_jit.1} parent=0 // pred_check_branch
    %16 = sbr.rel (0) target = $region17
  $region16: #{_forward_jit.1} parent=0 // pred_region
    _
  $region17: #{_forward_jit.1} parent=0 // pred_fallthru
    _
  %v17 = vld [vmem:[%s0] sm:$0x77]
  %v18 = vld [vmem:[%s2] sm:$0xff]
  %v19 = vld [vmem:[%s3] sm:$0xff]
  %21 = vset.pattern.permute.xlu0 0
  %22 = vperm.xlu0 %21, %v19
  %v23 = vpop.permute.xlu0 %22
  %v26 = vcombine.high %v17, %v17
  %vm27 = vcmask 23552
  %v29 = vsel %vm27, %v18, 0
  %vm31 = vcmask 1042432
  %v32 = vsel %vm31, %v17, 0
  %v34 = vsel %vm31, %v26, 0
  %36 = vmatprep.subr.mxu0 0.0
  %37 = vmatpush1.msra.mxu0 0.0
  %38 = vmatprep.subr.mxu0 0.0
  %39 = vmatpush1.msra.mxu0 0.0
  %40 = vmatprep.subr.mxu0 0.0
  %41 = vmatpush1.msra.mxu0 0.0
  %42 = vmatprep.subr.mxu0 0.0
  %43 = vmatpush1.msra.mxu0 0.0
  %44 = vmatprep.subr.mxu0 0.0
  %45 = vmatpush1.msra.mxu0 0.0
  %46 = vmatprep.subr.mxu0 0.0
  %47 = vmatpush1.msra.mxu0 0.0
  %48 = vmatprep.subr.mxu0 0.0
  %49 = vmatpush1.msra.mxu0 0.0
  %50 = vmatprep.subr.mxu0 0.0
  %51 = vmatpush1.msra.mxu0 0.0
  %52 = vmatprep.subr.mxu0 0.0
  %53 = vmatpush1.msra.mxu0 0.0
  %54 = vmatprep.subr.mxu0 0.0
  %55 = vmatpush1.msra.mxu0 0.0
  %56 = vmatprep.subr.mxu0 0.0
  %57 = vmatpush1.msra.mxu0 0.0
  %58 = vmatprep.subr.mxu0 0.0
  %59 = vmatpush1.msra.mxu0 0.0
  %60 = vmatprep.subr.mxu0 0.0
  %61 = vmatpush1.msra.mxu0 0.0
  %62 = vmatprep.subr.mxu0 0.0
  %63 = vmatpush1.msra.mxu0 0.0
  %64 = vmatprep.subr.mxu0 0.0
  %65 = vmatpush1.msra.mxu0 0.0
  %66 = vmatprep.subr.mxu0 %v34
  %67 = vmatpush1.msra.mxu0 %v32
  %68 = vmatprep.subr.mxu0 0.0
  %69 = vmatpush2.msra.mxu0 0.0
  %70 = vmatprep.subr.mxu0 0.0
  %71 = vmatpush2.msra.mxu0 0.0
  %72 = vmatprep.subr.mxu0 0.0
  %73 = vmatpush2.msra.mxu0 0.0
  %74 = vmatprep.subr.mxu0 0.0
  %75 = vmatpush2.msra.mxu0 0.0
  %76 = vmatprep.subr.mxu0 0.0
  %77 = vmatpush2.msra.mxu0 0.0
  %78 = vmatprep.subr.mxu0 0.0
  %79 = vmatpush2.msra.mxu0 0.0
  %80 = vmatprep.subr.mxu0 0.0
  %81 = vmatpush2.msra.mxu0 0.0
  %82 = vmatprep.subr.mxu0 0.0
  %83 = vmatpush2.msra.mxu0 0.0
  %84 = vmatprep.subr.mxu0 0.0
  %85 = vmatpush2.msra.mxu0 0.0
  %86 = vmatprep.subr.mxu0 0.0
  %87 = vmatpush2.msra.mxu0 0.0
  %88 = vmatprep.subr.mxu0 0.0
  %89 = vmatpush2.msra.mxu0 0.0
  %90 = vmatprep.subr.mxu0 0.0
  %91 = vmatpush2.msra.mxu0 0.0
  %92 = vmatprep.subr.mxu0 0.0
  %93 = vmatpush2.msra.mxu0 0.0
  %94 = vmatprep.subr.mxu0 0.0
  %95 = vmatpush2.msra.mxu0 0.0
  %96 = vmatprep.subr.mxu0 0.0
  %97 = vmatpush2.msra.mxu0 0.0
  %98 = vmatprep.subr.mxu0 0.0
  %99 = vmatpush2.msra.mxu0 0.0
  %100 = vmatprep.mubr.f32.mxu0 0.0
  %101 = vmatmul.mubr.f32.gmra.mxu0 %v29
  %v102 = vpop.f32.mrf.mxu0
  %v103 = vadd.f32 %v23, %v102
  %v104 = vpop.f32.mrf.mxu0
  %v105 = vadd.f32 %v23, %v104
  %106 = vdwg.mxu0
  %v107 = vmax.f32 %v103, 0.0
  %v108 = vmax.f32 %v105, 0.0
  %v109 = vld [vmem:[%s2 + $0x8] sm:$0xff]
  %v110 = vld [vmem:[%s2 + $0x10] sm:$0xff]
  %v111 = vld [vmem:[%s3 + $0x8] sm:$0xff]
  %v112 = vld [vmem:[%s3 + $0x10] sm:$0xff]
  %114 = vset.pattern.permute.xlu0 0
  %115 = vperm.xlu0 %114, %v111
  %v116 = vpop.permute.xlu0 %115
  %119 = vset.pattern.permute.xlu0 0
  %120 = vperm.xlu0 %119, %v112
  %v121 = vpop.permute.xlu0 %120
  %vm123 = vcmask 64512
  %v125 = vsel %vm123, %v109, 0
  %v128 = vsel %vm123, %v110, 0
  %130 = vmatprep.subr.mxu0 0.0
  %131 = vmatpush1.msra.mxu0 0.0
  %132 = vmatprep.subr.mxu0 0.0
  %133 = vmatpush1.msra.mxu0 0.0
  %134 = vmatprep.subr.mxu0 0.0
  %135 = vmatpush1.msra.mxu0 0.0
  %136 = vmatprep.subr.mxu0 0.0
  %137 = vmatpush1.msra.mxu0 0.0
  %138 = vmatprep.subr.mxu0 0.0
  %139 = vmatpush1.msra.mxu0 0.0
  %140 = vmatprep.subr.mxu0 0.0
  %141 = vmatpush1.msra.mxu0 0.0
  %142 = vmatprep.subr.mxu0 0.0
  %143 = vmatpush1.msra.mxu0 0.0
  %144 = vmatprep.subr.mxu0 0.0
  %145 = vmatpush1.msra.mxu0 0.0
  %146 = vmatprep.subr.mxu0 0.0
  %147 = vmatpush1.msra.mxu0 0.0
  %148 = vmatprep.subr.mxu0 0.0
  %149 = vmatpush1.msra.mxu0 0.0
  %150 = vmatprep.subr.mxu0 0.0
  %151 = vmatpush1.msra.mxu0 0.0
  %152 = vmatprep.subr.mxu0 0.0
  %153 = vmatpush1.msra.mxu0 0.0
  %154 = vmatprep.subr.mxu0 0.0
  %155 = vmatpush1.msra.mxu0 0.0
  %156 = vmatprep.subr.mxu0 0.0
  %157 = vmatpush1.msra.mxu0 0.0
  %158 = vmatprep.subr.mxu0 0.0
  %159 = vmatpush1.msra.mxu0 0.0
  %160 = vmatprep.subr.mxu0 %v108
  %161 = vmatpush1.msra.mxu0 %v107
  %162 = vmatprep.subr.mxu0 0.0
  %163 = vmatpush2.msra.mxu0 0.0
  %164 = vmatprep.subr.mxu0 0.0
  %165 = vmatpush2.msra.mxu0 0.0
  %166 = vmatprep.subr.mxu0 0.0
  %167 = vmatpush2.msra.mxu0 0.0
  %168 = vmatprep.subr.mxu0 0.0
  %169 = vmatpush2.msra.mxu0 0.0
  %170 = vmatprep.subr.mxu0 0.0
  %171 = vmatpush2.msra.mxu0 0.0
  %172 = vmatprep.subr.mxu0 0.0
  %173 = vmatpush2.msra.mxu0 0.0
  %174 = vmatprep.subr.mxu0 0.0
  %175 = vmatpush2.msra.mxu0 0.0
  %176 = vmatprep.subr.mxu0 0.0
  %177 = vmatpush2.msra.mxu0 0.0
  %178 = vmatprep.subr.mxu0 0.0
  %179 = vmatpush2.msra.mxu0 0.0
  %180 = vmatprep.subr.mxu0 0.0
  %181 = vmatpush2.msra.mxu0 0.0
  %182 = vmatprep.subr.mxu0 0.0
  %183 = vmatpush2.msra.mxu0 0.0
  %184 = vmatprep.subr.mxu0 0.0
  %185 = vmatpush2.msra.mxu0 0.0
  %186 = vmatprep.subr.mxu0 0.0
  %187 = vmatpush2.msra.mxu0 0.0
  %188 = vmatprep.subr.mxu0 0.0
  %189 = vmatpush2.msra.mxu0 0.0
  %190 = vmatprep.subr.mxu0 0.0
  %191 = vmatpush2.msra.mxu0 0.0
  %192 = vmatprep.subr.mxu0 0.0
  %193 = vmatpush2.msra.mxu0 0.0
  %194 = vmatprep.mubr.f32.mxu0 0.0
  %195 = vmatmul.mubr.f32.gmra.mxu0 %v125
  %v196 = vpop.f32.mrf.mxu0
  %v197 = vadd.f32 %v116, %v196
  %v198 = vpop.f32.mrf.mxu0
  %v199 = vadd.f32 %v116, %v198
  %200 = vmatprep.mubr.f32.mxu0 0.0
  %201 = vmatmul.mubr.f32.gmra.mxu0 %v128
  %v202 = vpop.f32.mrf.mxu0
  %v203 = vadd.f32 %v121, %v202
  %v204 = vpop.f32.mrf.mxu0
  %v205 = vadd.f32 %v121, %v204
  %206 = vdwg.mxu0
  %v207 = vmax.f32 %v197, 0.0
  %v208 = vmax.f32 %v199, 0.0
  %v209 = vmax.f32 %v203, 0.0
  %v210 = vmax.f32 %v205, 0.0
  %v211 = vld [vmem:[%s2 + $0x18] sm:$0xff]
  %v212 = vld [vmem:[%s2 + $0x20] sm:$0xff]
  %v213 = vld [vmem:[%s2 + $0x28] sm:$0xff]
  %v214 = vld [vmem:[%s2 + $0x30] sm:$0xff]
  %v215 = vld [vmem:[%s3 + $0x18] sm:$0xff]
  %v216 = vld [vmem:[%s3 + $0x20] sm:$0xff]
  %v217 = vld [vmem:[%s3 + $0x28] sm:$0xff]
  %v218 = vld [vmem:[%s3 + $0x30] sm:$0xff]
  %220 = vset.pattern.permute.xlu0 0
  %221 = vperm.xlu0 %220, %v215
  %v222 = vpop.permute.xlu0 %221
  %225 = vset.pattern.permute.xlu0 0
  %226 = vperm.xlu0 %225, %v216
  %v227 = vpop.permute.xlu0 %226
  %230 = vset.pattern.permute.xlu0 0
  %231 = vperm.xlu0 %230, %v217
  %v232 = vpop.permute.xlu0 %231
  %235 = vset.pattern.permute.xlu0 0
  %236 = vperm.xlu0 %235, %v218
  %v237 = vpop.permute.xlu0 %236
  %vm239 = vcmask 130048
  %v241 = vsel %vm239, %v211, 0
  %v244 = vsel %vm239, %v212, 0
  %v247 = vsel %vm239, %v213, 0
  %v250 = vsel %vm239, %v214, 0
  %252 = vmatprep.subr.mxu0 0.0
  %253 = vmatpush1.msra.mxu0 0.0
  %254 = vmatprep.subr.mxu0 0.0
  %255 = vmatpush1.msra.mxu0 0.0
  %256 = vmatprep.subr.mxu0 0.0
  %257 = vmatpush1.msra.mxu0 0.0
  %258 = vmatprep.subr.mxu0 0.0
  %259 = vmatpush1.msra.mxu0 0.0
  %260 = vmatprep.subr.mxu0 0.0
  %261 = vmatpush1.msra.mxu0 0.0
  %262 = vmatprep.subr.mxu0 0.0
  %263 = vmatpush1.msra.mxu0 0.0
  %264 = vmatprep.subr.mxu0 0.0
  %265 = vmatpush1.msra.mxu0 0.0
  %266 = vmatprep.subr.mxu0 0.0
  %267 = vmatpush1.msra.mxu0 0.0
  %268 = vmatprep.subr.mxu0 0.0
  %269 = vmatpush1.msra.mxu0 0.0
  %270 = vmatprep.subr.mxu0 0.0
  %271 = vmatpush1.msra.mxu0 0.0
  %272 = vmatprep.subr.mxu0 0.0
  %273 = vmatpush1.msra.mxu0 0.0
  %274 = vmatprep.subr.mxu0 0.0
  %275 = vmatpush1.msra.mxu0 0.0
  %276 = vmatprep.subr.mxu0 0.0
  %277 = vmatpush1.msra.mxu0 0.0
  %278 = vmatprep.subr.mxu0 0.0
  %279 = vmatpush1.msra.mxu0 0.0
  %280 = vmatprep.subr.mxu0 %v210
  %281 = vmatpush1.msra.mxu0 %v209
  %282 = vmatprep.subr.mxu0 %v208
  %283 = vmatpush1.msra.mxu0 %v207
  %284 = vmatprep.subr.mxu0 0.0
  %285 = vmatpush2.msra.mxu0 0.0
  %286 = vmatprep.subr.mxu0 0.0
  %287 = vmatpush2.msra.mxu0 0.0
  %288 = vmatprep.subr.mxu0 0.0
  %289 = vmatpush2.msra.mxu0 0.0
  %290 = vmatprep.subr.mxu0 0.0
  %291 = vmatpush2.msra.mxu0 0.0
  %292 = vmatprep.subr.mxu0 0.0
  %293 = vmatpush2.msra.mxu0 0.0
  %294 = vmatprep.subr.mxu0 0.0
  %295 = vmatpush2.msra.mxu0 0.0
  %296 = vmatprep.subr.mxu0 0.0
  %297 = vmatpush2.msra.mxu0 0.0
  %298 = vmatprep.subr.mxu0 0.0
  %299 = vmatpush2.msra.mxu0 0.0
  %300 = vmatprep.subr.mxu0 0.0
  %301 = vmatpush2.msra.mxu0 0.0
  %302 = vmatprep.subr.mxu0 0.0
  %303 = vmatpush2.msra.mxu0 0.0
  %304 = vmatprep.subr.mxu0 0.0
  %305 = vmatpush2.msra.mxu0 0.0
  %306 = vmatprep.subr.mxu0 0.0
  %307 = vmatpush2.msra.mxu0 0.0
  %308 = vmatprep.subr.mxu0 0.0
  %309 = vmatpush2.msra.mxu0 0.0
  %310 = vmatprep.subr.mxu0 0.0
  %311 = vmatpush2.msra.mxu0 0.0
  %312 = vmatprep.subr.mxu0 0.0
  %313 = vmatpush2.msra.mxu0 0.0
  %314 = vmatprep.subr.mxu0 0.0
  %315 = vmatpush2.msra.mxu0 0.0
  %316 = vmatprep.mubr.f32.mxu0 0.0
  %317 = vmatmul.mubr.f32.gmra.mxu0 %v241
  %v318 = vpop.f32.mrf.mxu0
  %v319 = vadd.f32 %v222, %v318
  %v320 = vpop.f32.mrf.mxu0
  %v321 = vadd.f32 %v222, %v320
  %322 = vmatprep.mubr.f32.mxu0 0.0
  %323 = vmatmul.mubr.f32.gmra.mxu0 %v244
  %v324 = vpop.f32.mrf.mxu0
  %v325 = vadd.f32 %v227, %v324
  %v326 = vpop.f32.mrf.mxu0
  %v327 = vadd.f32 %v227, %v326
  %328 = vmatprep.mubr.f32.mxu0 0.0
  %329 = vmatmul.mubr.f32.gmra.mxu0 %v247
  %v330 = vpop.f32.mrf.mxu0
  %v331 = vadd.f32 %v232, %v330
  %v332 = vpop.f32.mrf.mxu0
  %v333 = vadd.f32 %v232, %v332
  %334 = vmatprep.mubr.f32.mxu0 0.0
  %335 = vmatmul.mubr.f32.gmra.mxu0 %v250
  %v336 = vpop.f32.mrf.mxu0
  %v337 = vadd.f32 %v237, %v336
  %v338 = vpop.f32.mrf.mxu0
  %v339 = vadd.f32 %v237, %v338
  %340 = vdwg.mxu0
  %v341 = vmax.f32 %v319, 0.0
  %v342 = vmax.f32 %v321, 0.0
  %v343 = vmax.f32 %v325, 0.0
  %v344 = vmax.f32 %v327, 0.0
  %v345 = vmax.f32 %v331, 0.0
  %v346 = vmax.f32 %v333, 0.0
  %v347 = vmax.f32 %v337, 0.0
  %v348 = vmax.f32 %v339, 0.0
  %v349 = vld [vmem:[%s2 + $0x38] sm:$0xff]
  %v350 = vld [vmem:[%s2 + $0x40] sm:$0xff]
  %v351 = vld [vmem:[%s2 + $0x48] sm:$0xff]
  %v352 = vld [vmem:[%s2 + $0x50] sm:$0xff]
  %v353 = vld [vmem:[%s3 + $0x38] sm:$0xff]
  %v354 = vld [vmem:[%s3 + $0x40] sm:$0xff]
  %v355 = vld [vmem:[%s3 + $0x48] sm:$0xff]
  %v356 = vld [vmem:[%s3 + $0x50] sm:$0xff]
  %358 = vset.pattern.permute.xlu0 0
  %359 = vperm.xlu0 %358, %v353
  %v360 = vpop.permute.xlu0 %359
  %363 = vset.pattern.permute.xlu0 0
  %364 = vperm.xlu0 %363, %v354
  %v365 = vpop.permute.xlu0 %364
  %368 = vset.pattern.permute.xlu0 0
  %369 = vperm.xlu0 %368, %v355
  %v370 = vpop.permute.xlu0 %369
  %373 = vset.pattern.permute.xlu0 0
  %374 = vperm.xlu0 %373, %v356
  %v375 = vpop.permute.xlu0 %374
  %vm377 = vcmask 261120
  %v379 = vsel %vm377, %v349, 0
  %v382 = vsel %vm377, %v350, 0
  %v385 = vsel %vm377, %v351, 0
  %v388 = vsel %vm377, %v352, 0
  %390 = vmatprep.subr.mxu0 0.0
  %391 = vmatpush1.msra.mxu0 0.0
  %392 = vmatprep.subr.mxu0 0.0
  %393 = vmatpush1.msra.mxu0 0.0
  %394 = vmatprep.subr.mxu0 0.0
  %395 = vmatpush1.msra.mxu0 0.0
  %396 = vmatprep.subr.mxu0 0.0
  %397 = vmatpush1.msra.mxu0 0.0
  %398 = vmatprep.subr.mxu0 0.0
  %399 = vmatpush1.msra.mxu0 0.0
  %400 = vmatprep.subr.mxu0 0.0
  %401 = vmatpush1.msra.mxu0 0.0
  %402 = vmatprep.subr.mxu0 0.0
  %403 = vmatpush1.msra.mxu0 0.0
  %404 = vmatprep.subr.mxu0 0.0
  %405 = vmatpush1.msra.mxu0 0.0
  %406 = vmatprep.subr.mxu0 0.0
  %407 = vmatpush1.msra.mxu0 0.0
  %408 = vmatprep.subr.mxu0 0.0
  %409 = vmatpush1.msra.mxu0 0.0
  %410 = vmatprep.subr.mxu0 0.0
  %411 = vmatpush1.msra.mxu0 0.0
  %412 = vmatprep.subr.mxu0 0.0
  %413 = vmatpush1.msra.mxu0 0.0
  %414 = vmatprep.subr.mxu0 %v348
  %415 = vmatpush1.msra.mxu0 %v347
  %416 = vmatprep.subr.mxu0 %v346
  %417 = vmatpush1.msra.mxu0 %v345
  %418 = vmatprep.subr.mxu0 %v344
  %419 = vmatpush1.msra.mxu0 %v343
  %420 = vmatprep.subr.mxu0 %v342
  %421 = vmatpush1.msra.mxu0 %v341
  %422 = vmatprep.subr.mxu0 0.0
  %423 = vmatpush2.msra.mxu0 0.0
  %424 = vmatprep.subr.mxu0 0.0
  %425 = vmatpush2.msra.mxu0 0.0
  %426 = vmatprep.subr.mxu0 0.0
  %427 = vmatpush2.msra.mxu0 0.0
  %428 = vmatprep.subr.mxu0 0.0
  %429 = vmatpush2.msra.mxu0 0.0
  %430 = vmatprep.subr.mxu0 0.0
  %431 = vmatpush2.msra.mxu0 0.0
  %432 = vmatprep.subr.mxu0 0.0
  %433 = vmatpush2.msra.mxu0 0.0
  %434 = vmatprep.subr.mxu0 0.0
  %435 = vmatpush2.msra.mxu0 0.0
  %436 = vmatprep.subr.mxu0 0.0
  %437 = vmatpush2.msra.mxu0 0.0
  %438 = vmatprep.subr.mxu0 0.0
  %439 = vmatpush2.msra.mxu0 0.0
  %440 = vmatprep.subr.mxu0 0.0
  %441 = vmatpush2.msra.mxu0 0.0
  %442 = vmatprep.subr.mxu0 0.0
  %443 = vmatpush2.msra.mxu0 0.0
  %444 = vmatprep.subr.mxu0 0.0
  %445 = vmatpush2.msra.mxu0 0.0
  %446 = vmatprep.subr.mxu0 0.0
  %447 = vmatpush2.msra.mxu0 0.0
  %448 = vmatprep.subr.mxu0 0.0
  %449 = vmatpush2.msra.mxu0 0.0
  %450 = vmatprep.subr.mxu0 0.0
  %451 = vmatpush2.msra.mxu0 0.0
  %452 = vmatprep.subr.mxu0 0.0
  %453 = vmatpush2.msra.mxu0 0.0
  %454 = vmatprep.mubr.f32.mxu0 0.0
  %455 = vmatmul.mubr.f32.gmra.mxu0 %v379
  %v456 = vpop.f32.mrf.mxu0
  %v457 = vadd.f32 %v360, %v456
  %v458 = vpop.f32.mrf.mxu0
  %v459 = vadd.f32 %v360, %v458
  %460 = vmatprep.mubr.f32.mxu0 0.0
  %461 = vmatmul.mubr.f32.gmra.mxu0 %v382
  %v462 = vpop.f32.mrf.mxu0
  %v463 = vadd.f32 %v365, %v462
  %v464 = vpop.f32.mrf.mxu0
  %v465 = vadd.f32 %v365, %v464
  %466 = vmatprep.mubr.f32.mxu0 0.0
  %467 = vmatmul.mubr.f32.gmra.mxu0 %v385
  %v468 = vpop.f32.mrf.mxu0
  %v469 = vadd.f32 %v370, %v468
  %v470 = vpop.f32.mrf.mxu0
  %v471 = vadd.f32 %v370, %v470
  %472 = vmatprep.mubr.f32.mxu0 0.0
  %473 = vmatmul.mubr.f32.gmra.mxu0 %v388
  %v474 = vpop.f32.mrf.mxu0
  %v475 = vadd.f32 %v375, %v474
  %v476 = vpop.f32.mrf.mxu0
  %v477 = vadd.f32 %v375, %v476
  %478 = vdwg.mxu0
  %v479 = vmax.f32 %v457, 0.0
  %v480 = vmax.f32 %v459, 0.0
  %v481 = vmax.f32 %v463, 0.0
  %v482 = vmax.f32 %v465, 0.0
  %v483 = vmax.f32 %v469, 0.0
  %v484 = vmax.f32 %v471, 0.0
  %v485 = vmax.f32 %v475, 0.0
  %v486 = vmax.f32 %v477, 0.0
  %v487 = vcombine.high %v479, 0.0
  %v489 = vunpack.c.l.s4 1983009808
  %v490 = vunpack.c.0.s8 %v489
  %v491 = vlaneseq
  %v492 = vshrl.u32 %v491, 7
  %v493 = vsub.s32 %v490, %v492
  %v494 = vrot.slane %v479, %v493
  %v496 = vunpack.c.l.s4 1983009808
  %v497 = vunpack.c.0.s8 %v496
  %v498 = vlaneseq
  %v499 = vshrl.u32 %v498, 7
  %v500 = vsub.s32 %v497, %v499
  %v501 = vrot.slane %v487, %v500
  %v502 = vcombine.high %v480, 0.0
  %v504 = vunpack.c.l.s4 1983009808
  %v505 = vunpack.c.0.s8 %v504
  %v506 = vlaneseq
  %v507 = vshrl.u32 %v506, 7
  %v508 = vsub.s32 %v505, %v507
  %v509 = vrot.slane %v480, %v508
  %v511 = vunpack.c.l.s4 1983009808
  %v512 = vunpack.c.0.s8 %v511
  %v513 = vlaneseq
  %v514 = vshrl.u32 %v513, 7
  %v515 = vsub.s32 %v512, %v514
  %v516 = vrot.slane %v502, %v515
  %v517 = vcombine.low %v494, %v509
  %v518 = vcombine.high %v494, %v509
  %v520 = vunpack.c.l.s4 1934713408
  %v521 = vunpack.c.0.s8 %v520
  %v522 = vlaneseq
  %v523 = vshrl.u32 %v522, 7
  %v524 = vsub.s32 %v521, %v523
  %v525 = vrot.slane %v517, %v524
  %v527 = vunpack.c.l.s4 1934713408
  %v528 = vunpack.c.0.s8 %v527
  %v529 = vlaneseq
  %v530 = vshrl.u32 %v529, 7
  %v531 = vsub.s32 %v528, %v530
  %v532 = vrot.slane %v518, %v531
  %v533 = vcombine.low %v501, %v516
  %v534 = vcombine.high %v501, %v516
  %v536 = vunpack.c.l.s4 1934713408
  %v537 = vunpack.c.0.s8 %v536
  %v538 = vlaneseq
  %v539 = vshrl.u32 %v538, 7
  %v540 = vsub.s32 %v537, %v539
  %v541 = vrot.slane %v533, %v540
  %v543 = vunpack.c.l.s4 1934713408
  %v544 = vunpack.c.0.s8 %v543
  %v545 = vlaneseq
  %v546 = vshrl.u32 %v545, 7
  %v547 = vsub.s32 %v544, %v546
  %v548 = vrot.slane %v534, %v547
  %v549 = vcombine.high %v525, 0.0
  %v550 = vcombine.high %v532, 0.0
  %v551 = vcombine.high %v541, 0.0
  %v552 = vcombine.high %v548, 0.0
  %v553 = vcombine.high %v481, 0.0
  %v555 = vunpack.c.l.s4 1983009808
  %v556 = vunpack.c.0.s8 %v555
  %v557 = vlaneseq
  %v558 = vshrl.u32 %v557, 7
  %v559 = vsub.s32 %v556, %v558
  %v560 = vrot.slane %v481, %v559
  %v562 = vunpack.c.l.s4 1983009808
  %v563 = vunpack.c.0.s8 %v562
  %v564 = vlaneseq
  %v565 = vshrl.u32 %v564, 7
  %v566 = vsub.s32 %v563, %v565
  %v567 = vrot.slane %v553, %v566
  %v568 = vcombine.high %v482, 0.0
  %v570 = vunpack.c.l.s4 1983009808
  %v571 = vunpack.c.0.s8 %v570
  %v572 = vlaneseq
  %v573 = vshrl.u32 %v572, 7
  %v574 = vsub.s32 %v571, %v573
  %v575 = vrot.slane %v482, %v574
  %v577 = vunpack.c.l.s4 1983009808
  %v578 = vunpack.c.0.s8 %v577
  %v579 = vlaneseq
  %v580 = vshrl.u32 %v579, 7
  %v581 = vsub.s32 %v578, %v580
  %v582 = vrot.slane %v568, %v581
  %v583 = vcombine.low %v560, %v575
  %v584 = vcombine.high %v560, %v575
  %v586 = vunpack.c.l.s4 1934713408
  %v587 = vunpack.c.0.s8 %v586
  %v588 = vlaneseq
  %v589 = vshrl.u32 %v588, 7
  %v590 = vsub.s32 %v587, %v589
  %v591 = vrot.slane %v583, %v590
  %v593 = vunpack.c.l.s4 1934713408
  %v594 = vunpack.c.0.s8 %v593
  %v595 = vlaneseq
  %v596 = vshrl.u32 %v595, 7
  %v597 = vsub.s32 %v594, %v596
  %v598 = vrot.slane %v584, %v597
  %v599 = vcombine.low %v567, %v582
  %v600 = vcombine.high %v567, %v582
  %v602 = vunpack.c.l.s4 1934713408
  %v603 = vunpack.c.0.s8 %v602
  %v604 = vlaneseq
  %v605 = vshrl.u32 %v604, 7
  %v606 = vsub.s32 %v603, %v605
  %v607 = vrot.slane %v599, %v606
  %v609 = vunpack.c.l.s4 1934713408
  %v610 = vunpack.c.0.s8 %v609
  %v611 = vlaneseq
  %v612 = vshrl.u32 %v611, 7
  %v613 = vsub.s32 %v610, %v612
  %v614 = vrot.slane %v600, %v613
  %v615 = vcombine.high %v591, 0.0
  %v616 = vcombine.high %v598, 0.0
  %v617 = vcombine.high %v607, 0.0
  %v618 = vcombine.high %v614, 0.0
  %v619 = vcombine.high %v483, 0.0
  %v621 = vunpack.c.l.s4 1983009808
  %v622 = vunpack.c.0.s8 %v621
  %v623 = vlaneseq
  %v624 = vshrl.u32 %v623, 7
  %v625 = vsub.s32 %v622, %v624
  %v626 = vrot.slane %v483, %v625
  %v628 = vunpack.c.l.s4 1983009808
  %v629 = vunpack.c.0.s8 %v628
  %v630 = vlaneseq
  %v631 = vshrl.u32 %v630, 7
  %v632 = vsub.s32 %v629, %v631
  %v633 = vrot.slane %v619, %v632
  %v634 = vcombine.high %v484, 0.0
  %v636 = vunpack.c.l.s4 1983009808
  %v637 = vunpack.c.0.s8 %v636
  %v638 = vlaneseq
  %v639 = vshrl.u32 %v638, 7
  %v640 = vsub.s32 %v637, %v639
  %v641 = vrot.slane %v484, %v640
  %v643 = vunpack.c.l.s4 1983009808
  %v644 = vunpack.c.0.s8 %v643
  %v645 = vlaneseq
  %v646 = vshrl.u32 %v645, 7
  %v647 = vsub.s32 %v644, %v646
  %v648 = vrot.slane %v634, %v647
  %v649 = vcombine.low %v626, %v641
  %v650 = vcombine.high %v626, %v641
  %v652 = vunpack.c.l.s4 1934713408
  %v653 = vunpack.c.0.s8 %v652
  %v654 = vlaneseq
  %v655 = vshrl.u32 %v654, 7
  %v656 = vsub.s32 %v653, %v655
  %v657 = vrot.slane %v649, %v656
  %v659 = vunpack.c.l.s4 1934713408
  %v660 = vunpack.c.0.s8 %v659
  %v661 = vlaneseq
  %v662 = vshrl.u32 %v661, 7
  %v663 = vsub.s32 %v660, %v662
  %v664 = vrot.slane %v650, %v663
  %v665 = vcombine.low %v633, %v648
  %v666 = vcombine.high %v633, %v648
  %v668 = vunpack.c.l.s4 1934713408
  %v669 = vunpack.c.0.s8 %v668
  %v670 = vlaneseq
  %v671 = vshrl.u32 %v670, 7
  %v672 = vsub.s32 %v669, %v671
  %v673 = vrot.slane %v665, %v672
  %v675 = vunpack.c.l.s4 1934713408
  %v676 = vunpack.c.0.s8 %v675
  %v677 = vlaneseq
  %v678 = vshrl.u32 %v677, 7
  %v679 = vsub.s32 %v676, %v678
  %v680 = vrot.slane %v666, %v679
  %v681 = vcombine.high %v657, 0.0
  %v682 = vcombine.high %v664, 0.0
  %v683 = vcombine.high %v673, 0.0
  %v684 = vcombine.high %v680, 0.0
  %v685 = vcombine.high %v485, 0.0
  %v687 = vunpack.c.l.s4 1983009808
  %v688 = vunpack.c.0.s8 %v687
  %v689 = vlaneseq
  %v690 = vshrl.u32 %v689, 7
  %v691 = vsub.s32 %v688, %v690
  %v692 = vrot.slane %v485, %v691
  %v694 = vunpack.c.l.s4 1983009808
  %v695 = vunpack.c.0.s8 %v694
  %v696 = vlaneseq
  %v697 = vshrl.u32 %v696, 7
  %v698 = vsub.s32 %v695, %v697
  %v699 = vrot.slane %v685, %v698
  %v700 = vcombine.high %v486, 0.0
  %v702 = vunpack.c.l.s4 1983009808
  %v703 = vunpack.c.0.s8 %v702
  %v704 = vlaneseq
  %v705 = vshrl.u32 %v704, 7
  %v706 = vsub.s32 %v703, %v705
  %v707 = vrot.slane %v486, %v706
  %v709 = vunpack.c.l.s4 1983009808
  %v710 = vunpack.c.0.s8 %v709
  %v711 = vlaneseq
  %v712 = vshrl.u32 %v711, 7
  %v713 = vsub.s32 %v710, %v712
  %v714 = vrot.slane %v700, %v713
  %v715 = vcombine.low %v692, %v707
  %v716 = vcombine.high %v692, %v707
  %v718 = vunpack.c.l.s4 1934713408
  %v719 = vunpack.c.0.s8 %v718
  %v720 = vlaneseq
  %v721 = vshrl.u32 %v720, 7
  %v722 = vsub.s32 %v719, %v721
  %v723 = vrot.slane %v715, %v722
  %v725 = vunpack.c.l.s4 1934713408
  %v726 = vunpack.c.0.s8 %v725
  %v727 = vlaneseq
  %v728 = vshrl.u32 %v727, 7
  %v729 = vsub.s32 %v726, %v728
  %v730 = vrot.slane %v716, %v729
  %v731 = vcombine.low %v699, %v714
  %v732 = vcombine.high %v699, %v714
  %v734 = vunpack.c.l.s4 1934713408
  %v735 = vunpack.c.0.s8 %v734
  %v736 = vlaneseq
  %v737 = vshrl.u32 %v736, 7
  %v738 = vsub.s32 %v735, %v737
  %v739 = vrot.slane %v731, %v738
  %v741 = vunpack.c.l.s4 1934713408
  %v742 = vunpack.c.0.s8 %v741
  %v743 = vlaneseq
  %v744 = vshrl.u32 %v743, 7
  %v745 = vsub.s32 %v742, %v744
  %v746 = vrot.slane %v732, %v745
  %v747 = vcombine.high %v723, 0.0
  %v748 = vcombine.high %v730, 0.0
  %v749 = vcombine.high %v739, 0.0
  %v750 = vcombine.high %v746, 0.0
  %vm751 = vcmask 1041408
  %v752 = vsel %vm751, %v525, -inf
  %753 = vmax.xlane.f32.xlu0 %v752
  %v754 = vpop.xlane.xlu0 %753
  %v755 = vsel %vm751, %v549, -inf
  %756 = vmax.xlane.f32.xlu0 %v755
  %v757 = vpop.xlane.xlu0 %756
  %v758 = vsel %vm751, %v532, -inf
  %759 = vmax.xlane.f32.xlu0 %v758
  %v760 = vpop.xlane.xlu0 %759
  %v761 = vsel %vm751, %v550, -inf
  %762 = vmax.xlane.f32.xlu0 %v761
  %v763 = vpop.xlane.xlu0 %762
  %v764 = vsel %vm751, %v541, -inf
  %765 = vmax.xlane.f32.xlu0 %v764
  %v766 = vpop.xlane.xlu0 %765
  %v767 = vsel %vm751, %v551, -inf
  %768 = vmax.xlane.f32.xlu0 %v767
  %v769 = vpop.xlane.xlu0 %768
  %v770 = vsel %vm751, %v548, -inf
  %771 = vmax.xlane.f32.xlu0 %v770
  %v772 = vpop.xlane.xlu0 %771
  %v773 = vsel %vm751, %v552, -inf
  %774 = vmax.xlane.f32.xlu0 %v773
  %v775 = vpop.xlane.xlu0 %774
  %v776 = vsel %vm751, %v591, -inf
  %777 = vmax.xlane.f32.xlu0 %v776
  %v778 = vpop.xlane.xlu0 %777
  %v779 = vsel %vm751, %v615, -inf
  %780 = vmax.xlane.f32.xlu0 %v779
  %v781 = vpop.xlane.xlu0 %780
  %v782 = vsel %vm751, %v598, -inf
  %783 = vmax.xlane.f32.xlu0 %v782
  %v784 = vpop.xlane.xlu0 %783
  %v785 = vsel %vm751, %v616, -inf
  %786 = vmax.xlane.f32.xlu0 %v785
  %v787 = vpop.xlane.xlu0 %786
  %v788 = vsel %vm751, %v607, -inf
  %789 = vmax.xlane.f32.xlu0 %v788
  %v790 = vpop.xlane.xlu0 %789
  %v791 = vsel %vm751, %v617, -inf
  %792 = vmax.xlane.f32.xlu0 %v791
  %v793 = vpop.xlane.xlu0 %792
  %v794 = vsel %vm751, %v614, -inf
  %795 = vmax.xlane.f32.xlu0 %v794
  %v796 = vpop.xlane.xlu0 %795
  %v797 = vsel %vm751, %v618, -inf
  %798 = vmax.xlane.f32.xlu0 %v797
  %v799 = vpop.xlane.xlu0 %798
  %v800 = vsel %vm751, %v657, -inf
  %801 = vmax.xlane.f32.xlu0 %v800
  %v802 = vpop.xlane.xlu0 %801
  %v803 = vsel %vm751, %v681, -inf
  %804 = vmax.xlane.f32.xlu0 %v803
  %v805 = vpop.xlane.xlu0 %804
  %v806 = vsel %vm751, %v664, -inf
  %807 = vmax.xlane.f32.xlu0 %v806
  %v808 = vpop.xlane.xlu0 %807
  %v809 = vsel %vm751, %v682, -inf
  %810 = vmax.xlane.f32.xlu0 %v809
  %v811 = vpop.xlane.xlu0 %810
  %v812 = vsel %vm751, %v673, -inf
  %813 = vmax.xlane.f32.xlu0 %v812
  %v814 = vpop.xlane.xlu0 %813
  %v815 = vsel %vm751, %v683, -inf
  %816 = vmax.xlane.f32.xlu0 %v815
  %v817 = vpop.xlane.xlu0 %816
  %v818 = vsel %vm751, %v680, -inf
  %819 = vmax.xlane.f32.xlu0 %v818
  %v820 = vpop.xlane.xlu0 %819
  %v821 = vsel %vm751, %v684, -inf
  %822 = vmax.xlane.f32.xlu0 %v821
  %v823 = vpop.xlane.xlu0 %822
  %v824 = vsel %vm751, %v723, -inf
  %825 = vmax.xlane.f32.xlu0 %v824
  %v826 = vpop.xlane.xlu0 %825
  %v827 = vsel %vm751, %v747, -inf
  %828 = vmax.xlane.f32.xlu0 %v827
  %v829 = vpop.xlane.xlu0 %828
  %v830 = vsel %vm751, %v730, -inf
  %831 = vmax.xlane.f32.xlu0 %v830
  %v832 = vpop.xlane.xlu0 %831
  %v833 = vsel %vm751, %v748, -inf
  %834 = vmax.xlane.f32.xlu0 %v833
  %v835 = vpop.xlane.xlu0 %834
  %v836 = vsel %vm751, %v739, -inf
  %837 = vmax.xlane.f32.xlu0 %v836
  %v838 = vpop.xlane.xlu0 %837
  %v839 = vsel %vm751, %v749, -inf
  %840 = vmax.xlane.f32.xlu0 %v839
  %v841 = vpop.xlane.xlu0 %840
  %v842 = vsel %vm751, %v746, -inf
  %843 = vmax.xlane.f32.xlu0 %v842
  %v844 = vpop.xlane.xlu0 %843
  %v845 = vsel %vm751, %v750, -inf
  %846 = vmax.xlane.f32.xlu0 %v845
  %v847 = vpop.xlane.xlu0 %846
  %v848 = vld [vmem:[%s2 + $0x58] sm:$0xff]
  %v849 = vld [vmem:[%s2 + $0x60] sm:$0xff]
  %v850 = vld [vmem:[%s2 + $0x68] sm:$0xff]
  %v851 = vld [vmem:[%s2 + $0x70] sm:$0xff]
  %v852 = vld [vmem:[%s3 + $0x58] sm:$0xff]
  %v853 = vld [vmem:[%s3 + $0x60] sm:$0xff]
  %v854 = vld [vmem:[%s3 + $0x68] sm:$0xff]
  %v855 = vld [vmem:[%s3 + $0x70] sm:$0xff]
  %857 = vset.pattern.permute.xlu0 0
  %858 = vperm.xlu0 %857, %v852
  %v859 = vpop.permute.xlu0 %858
  %862 = vset.pattern.permute.xlu0 0
  %863 = vperm.xlu0 %862, %v853
  %v864 = vpop.permute.xlu0 %863
  %867 = vset.pattern.permute.xlu0 0
  %868 = vperm.xlu0 %867, %v854
  %v869 = vpop.permute.xlu0 %868
  %872 = vset.pattern.permute.xlu0 0
  %873 = vperm.xlu0 %872, %v855
  %v874 = vpop.permute.xlu0 %873
  %v908 = vlaneseq
  %v909 = vand.u32 %v908, 127
  %v910 = vlaneseq
  %v911 = vshrl.u32 %v910, 7
  %v912 = vsub.s32 %v909, %v911
  %v913 = vrot.slane %v754, %v912
  %v914 = vlaneseq
  %v915 = vshrl.u32 %v914, 7
  %v916 = vsub.s32 %v909, %v915
  %v917 = vrot.slane %v757, %v916
  %v918 = vlaneseq
  %v919 = vshrl.u32 %v918, 7
  %v920 = vsub.s32 %v909, %v919
  %v921 = vrot.slane %v760, %v920
  %v922 = vlaneseq
  %v923 = vshrl.u32 %v922, 7
  %v924 = vsub.s32 %v909, %v923
  %v925 = vrot.slane %v763, %v924
  %v926 = vlaneseq
  %v927 = vshrl.u32 %v926, 7
  %v928 = vsub.s32 %v909, %v927
  %v929 = vrot.slane %v766, %v928
  %v930 = vlaneseq
  %v931 = vshrl.u32 %v930, 7
  %v932 = vsub.s32 %v909, %v931
  %v933 = vrot.slane %v769, %v932
  %v934 = vlaneseq
  %v935 = vshrl.u32 %v934, 7
  %v936 = vsub.s32 %v909, %v935
  %v937 = vrot.slane %v772, %v936
  %v938 = vlaneseq
  %v939 = vshrl.u32 %v938, 7
  %v940 = vsub.s32 %v909, %v939
  %v941 = vrot.slane %v775, %v940
  %v942 = vlaneseq
  %v943 = vshrl.u32 %v942, 7
  %v944 = vsub.s32 %v909, %v943
  %v945 = vrot.slane %v778, %v944
  %v946 = vlaneseq
  %v947 = vshrl.u32 %v946, 7
  %v948 = vsub.s32 %v909, %v947
  %v949 = vrot.slane %v781, %v948
  %v950 = vlaneseq
  %v951 = vshrl.u32 %v950, 7
  %v952 = vsub.s32 %v909, %v951
  %v953 = vrot.slane %v784, %v952
  %v954 = vlaneseq
  %v955 = vshrl.u32 %v954, 7
  %v956 = vsub.s32 %v909, %v955
  %v957 = vrot.slane %v787, %v956
  %v958 = vlaneseq
  %v959 = vshrl.u32 %v958, 7
  %v960 = vsub.s32 %v909, %v959
  %v961 = vrot.slane %v790, %v960
  %v962 = vlaneseq
  %v963 = vshrl.u32 %v962, 7
  %v964 = vsub.s32 %v909, %v963
  %v965 = vrot.slane %v793, %v964
  %v966 = vlaneseq
  %v967 = vshrl.u32 %v966, 7
  %v968 = vsub.s32 %v909, %v967
  %v969 = vrot.slane %v796, %v968
  %v970 = vlaneseq
  %v971 = vshrl.u32 %v970, 7
  %v972 = vsub.s32 %v909, %v971
  %v973 = vrot.slane %v799, %v972
  %v974 = vlaneseq
  %v975 = vshrl.u32 %v974, 7
  %v976 = vsub.s32 %v909, %v975
  %v977 = vrot.slane %v802, %v976
  %v978 = vlaneseq
  %v979 = vshrl.u32 %v978, 7
  %v980 = vsub.s32 %v909, %v979
  %v981 = vrot.slane %v805, %v980
  %v982 = vlaneseq
  %v983 = vshrl.u32 %v982, 7
  %v984 = vsub.s32 %v909, %v983
  %v985 = vrot.slane %v808, %v984
  %v986 = vlaneseq
  %v987 = vshrl.u32 %v986, 7
  %v988 = vsub.s32 %v909, %v987
  %v989 = vrot.slane %v811, %v988
  %v990 = vlaneseq
  %v991 = vshrl.u32 %v990, 7
  %v992 = vsub.s32 %v909, %v991
  %v993 = vrot.slane %v814, %v992
  %v994 = vlaneseq
  %v995 = vshrl.u32 %v994, 7
  %v996 = vsub.s32 %v909, %v995
  %v997 = vrot.slane %v817, %v996
  %v998 = vlaneseq
  %v999 = vshrl.u32 %v998, 7
  %v1000 = vsub.s32 %v909, %v999
  %v1001 = vrot.slane %v820, %v1000
  %v1002 = vlaneseq
  %v1003 = vshrl.u32 %v1002, 7
  %v1004 = vsub.s32 %v909, %v1003
  %v1005 = vrot.slane %v823, %v1004
  %v1006 = vlaneseq
  %v1007 = vshrl.u32 %v1006, 7
  %v1008 = vsub.s32 %v909, %v1007
  %v1009 = vrot.slane %v826, %v1008
  %v1010 = vlaneseq
  %v1011 = vshrl.u32 %v1010, 7
  %v1012 = vsub.s32 %v909, %v1011
  %v1013 = vrot.slane %v829, %v1012
  %v1014 = vlaneseq
  %v1015 = vshrl.u32 %v1014, 7
  %v1016 = vsub.s32 %v909, %v1015
  %v1017 = vrot.slane %v832, %v1016
  %v1018 = vlaneseq
  %v1019 = vshrl.u32 %v1018, 7
  %v1020 = vsub.s32 %v909, %v1019
  %v1021 = vrot.slane %v835, %v1020
  %v1022 = vlaneseq
  %v1023 = vshrl.u32 %v1022, 7
  %v1024 = vsub.s32 %v909, %v1023
  %v1025 = vrot.slane %v838, %v1024
  %v1026 = vlaneseq
  %v1027 = vshrl.u32 %v1026, 7
  %v1028 = vsub.s32 %v909, %v1027
  %v1029 = vrot.slane %v841, %v1028
  %v1030 = vlaneseq
  %v1031 = vshrl.u32 %v1030, 7
  %v1032 = vsub.s32 %v909, %v1031
  %v1033 = vrot.slane %v844, %v1032
  %v1034 = vlaneseq
  %v1035 = vshrl.u32 %v1034, 7
  %v1036 = vsub.s32 %v909, %v1035
  %v1037 = vrot.slane %v847, %v1036
  %vm1038 = vcmask 1041409
  %v1039 = vsel %vm1038, %v917, %v913
  %vm1040 = vcmask 1042434
  %v1041 = vsel %vm1040, %v921, %v1039
  %vm1042 = vcmask 1043459
  %v1043 = vsel %vm1042, %v925, %v1041
  %vm1044 = vcmask 1044484
  %v1045 = vsel %vm1044, %v929, %v1043
  %vm1046 = vcmask 1045509
  %v1047 = vsel %vm1046, %v933, %v1045
  %vm1048 = vcmask 1046534
  %v1049 = vsel %vm1048, %v937, %v1047
  %vm1050 = vcmask 1047559
  %v1051 = vsel %vm1050, %v941, %v1049
  %v1052 = vsel %vm1038, %v949, %v945
  %v1053 = vsel %vm1040, %v953, %v1052
  %v1054 = vsel %vm1042, %v957, %v1053
  %v1055 = vsel %vm1044, %v961, %v1054
  %v1056 = vsel %vm1046, %v965, %v1055
  %v1057 = vsel %vm1048, %v969, %v1056
  %v1058 = vsel %vm1050, %v973, %v1057
  %v1059 = vsel %vm1038, %v981, %v977
  %v1060 = vsel %vm1040, %v985, %v1059
  %v1061 = vsel %vm1042, %v989, %v1060
  %v1062 = vsel %vm1044, %v993, %v1061
  %v1063 = vsel %vm1046, %v997, %v1062
  %v1064 = vsel %vm1048, %v1001, %v1063
  %v1065 = vsel %vm1050, %v1005, %v1064
  %v1066 = vsel %vm1038, %v1013, %v1009
  %v1067 = vsel %vm1040, %v1017, %v1066
  %v1068 = vsel %vm1042, %v1021, %v1067
  %v1069 = vsel %vm1044, %v1025, %v1068
  %v1070 = vsel %vm1046, %v1029, %v1069
  %v1071 = vsel %vm1048, %v1033, %v1070
  %v1072 = vsel %vm1050, %v1037, %v1071
  %v1078 = vsel %vm377, %v848, 0
  %v1081 = vsel %vm377, %v849, 0
  %v1084 = vsel %vm377, %v850, 0
  %v1087 = vsel %vm377, %v851, 0
  %1089 = vmatprep.subr.mxu0 0.0
  %1090 = vmatpush1.msra.mxu0 0.0
  %1091 = vmatprep.subr.mxu0 0.0
  %1092 = vmatpush1.msra.mxu0 0.0
  %1093 = vmatprep.subr.mxu0 0.0
  %1094 = vmatpush1.msra.mxu0 0.0
  %1095 = vmatprep.subr.mxu0 0.0
  %1096 = vmatpush1.msra.mxu0 0.0
  %1097 = vmatprep.subr.mxu0 0.0
  %1098 = vmatpush1.msra.mxu0 0.0
  %1099 = vmatprep.subr.mxu0 0.0
  %1100 = vmatpush1.msra.mxu0 0.0
  %1101 = vmatprep.subr.mxu0 0.0
  %1102 = vmatpush1.msra.mxu0 0.0
  %1103 = vmatprep.subr.mxu0 0.0
  %1104 = vmatpush1.msra.mxu0 0.0
  %1105 = vmatprep.subr.mxu0 0.0
  %1106 = vmatpush1.msra.mxu0 0.0
  %1107 = vmatprep.subr.mxu0 0.0
  %1108 = vmatpush1.msra.mxu0 0.0
  %1109 = vmatprep.subr.mxu0 0.0
  %1110 = vmatpush1.msra.mxu0 0.0
  %1111 = vmatprep.subr.mxu0 0.0
  %1112 = vmatpush1.msra.mxu0 0.0
  %1113 = vmatprep.subr.mxu0 0.0
  %1114 = vmatpush1.msra.mxu0 %v1072
  %1115 = vmatprep.subr.mxu0 0.0
  %1116 = vmatpush1.msra.mxu0 %v1065
  %1117 = vmatprep.subr.mxu0 0.0
  %1118 = vmatpush1.msra.mxu0 %v1058
  %1119 = vmatprep.subr.mxu0 0.0
  %1120 = vmatpush1.msra.mxu0 %v1051
  %1121 = vmatprep.subr.mxu0 0.0
  %1122 = vmatpush2.msra.mxu0 0.0
  %1123 = vmatprep.subr.mxu0 0.0
  %1124 = vmatpush2.msra.mxu0 0.0
  %1125 = vmatprep.subr.mxu0 0.0
  %1126 = vmatpush2.msra.mxu0 0.0
  %1127 = vmatprep.subr.mxu0 0.0
  %1128 = vmatpush2.msra.mxu0 0.0
  %1129 = vmatprep.subr.mxu0 0.0
  %1130 = vmatpush2.msra.mxu0 0.0
  %1131 = vmatprep.subr.mxu0 0.0
  %1132 = vmatpush2.msra.mxu0 0.0
  %1133 = vmatprep.subr.mxu0 0.0
  %1134 = vmatpush2.msra.mxu0 0.0
  %1135 = vmatprep.subr.mxu0 0.0
  %1136 = vmatpush2.msra.mxu0 0.0
  %1137 = vmatprep.subr.mxu0 0.0
  %1138 = vmatpush2.msra.mxu0 0.0
  %1139 = vmatprep.subr.mxu0 0.0
  %1140 = vmatpush2.msra.mxu0 0.0
  %1141 = vmatprep.subr.mxu0 0.0
  %1142 = vmatpush2.msra.mxu0 0.0
  %1143 = vmatprep.subr.mxu0 0.0
  %1144 = vmatpush2.msra.mxu0 0.0
  %1145 = vmatprep.subr.mxu0 0.0
  %1146 = vmatpush2.msra.mxu0 0.0
  %1147 = vmatprep.subr.mxu0 0.0
  %1148 = vmatpush2.msra.mxu0 0.0
  %1149 = vmatprep.subr.mxu0 0.0
  %1150 = vmatpush2.msra.mxu0 0.0
  %1151 = vmatprep.subr.mxu0 0.0
  %1152 = vmatpush2.msra.mxu0 0.0
  %1153 = vmatprep.mubr.f32.mxu0 0.0
  %1154 = vmatmul.mubr.f32.gmra.mxu0 %v1078
  %v1155 = vpop.f32.mrf.mxu0
  %v1156 = vadd.f32 %v859, %v1155
  %v1157 = vpop.f32.mrf.mxu0
  %1158 = vmatprep.mubr.f32.mxu0 0.0
  %1159 = vmatmul.mubr.f32.gmra.mxu0 %v1081
  %v1160 = vpop.f32.mrf.mxu0
  %v1161 = vadd.f32 %v864, %v1160
  %v1162 = vpop.f32.mrf.mxu0
  %1163 = vmatprep.mubr.f32.mxu0 0.0
  %1164 = vmatmul.mubr.f32.gmra.mxu0 %v1084
  %v1165 = vpop.f32.mrf.mxu0
  %v1166 = vadd.f32 %v869, %v1165
  %v1167 = vpop.f32.mrf.mxu0
  %1168 = vmatprep.mubr.f32.mxu0 0.0
  %1169 = vmatmul.mubr.f32.gmra.mxu0 %v1087
  %v1170 = vpop.f32.mrf.mxu0
  %v1171 = vadd.f32 %v874, %v1170
  %v1172 = vpop.f32.mrf.mxu0
  %1173 = vdwg.mxu0
  %v1174 = vmax.f32 %v1156, 0.0
  %v1175 = vmax.f32 %v1161, 0.0
  %v1176 = vmax.f32 %v1166, 0.0
  %v1177 = vmax.f32 %v1171, 0.0
  %v1178 = vld [vmem:[%s2 + $0x78] sm:$0xff]
  %v1179 = vld [vmem:[%s2 + $0x80] sm:$0xff]
  %v1180 = vld [vmem:[%s2 + $0x88] sm:$0xff]
  %v1181 = vld [vmem:[%s2 + $0x90] sm:$0xff]
  %v1182 = vld [vmem:[%s3 + $0x78] sm:$0xff]
  %v1183 = vld [vmem:[%s3 + $0x80] sm:$0xff]
  %v1184 = vld [vmem:[%s3 + $0x88] sm:$0xff]
  %v1185 = vld [vmem:[%s3 + $0x90] sm:$0xff]
  %1187 = vset.pattern.permute.xlu0 0
  %1188 = vperm.xlu0 %1187, %v1182
  %v1189 = vpop.permute.xlu0 %1188
  %1192 = vset.pattern.permute.xlu0 0
  %1193 = vperm.xlu0 %1192, %v1183
  %v1194 = vpop.permute.xlu0 %1193
  %1197 = vset.pattern.permute.xlu0 0
  %1198 = vperm.xlu0 %1197, %v1184
  %v1199 = vpop.permute.xlu0 %1198
  %1202 = vset.pattern.permute.xlu0 0
  %1203 = vperm.xlu0 %1202, %v1185
  %v1204 = vpop.permute.xlu0 %1203
  %v1207 = vsel %vm377, %v1178, 0
  %v1210 = vsel %vm377, %v1179, 0
  %v1213 = vsel %vm377, %v1180, 0
  %v1216 = vsel %vm377, %v1181, 0
  %1218 = vmatprep.subr.mxu0 0.0
  %1219 = vmatpush1.msra.mxu0 0.0
  %1220 = vmatprep.subr.mxu0 0.0
  %1221 = vmatpush1.msra.mxu0 0.0
  %1222 = vmatprep.subr.mxu0 0.0
  %1223 = vmatpush1.msra.mxu0 0.0
  %1224 = vmatprep.subr.mxu0 0.0
  %1225 = vmatpush1.msra.mxu0 0.0
  %1226 = vmatprep.subr.mxu0 0.0
  %1227 = vmatpush1.msra.mxu0 0.0
  %1228 = vmatprep.subr.mxu0 0.0
  %1229 = vmatpush1.msra.mxu0 0.0
  %1230 = vmatprep.subr.mxu0 0.0
  %1231 = vmatpush1.msra.mxu0 0.0
  %1232 = vmatprep.subr.mxu0 0.0
  %1233 = vmatpush1.msra.mxu0 0.0
  %1234 = vmatprep.subr.mxu0 0.0
  %1235 = vmatpush1.msra.mxu0 0.0
  %1236 = vmatprep.subr.mxu0 0.0
  %1237 = vmatpush1.msra.mxu0 0.0
  %1238 = vmatprep.subr.mxu0 0.0
  %1239 = vmatpush1.msra.mxu0 0.0
  %1240 = vmatprep.subr.mxu0 0.0
  %1241 = vmatpush1.msra.mxu0 0.0
  %1242 = vmatprep.subr.mxu0 0.0
  %1243 = vmatpush1.msra.mxu0 %v1177
  %1244 = vmatprep.subr.mxu0 0.0
  %1245 = vmatpush1.msra.mxu0 %v1176
  %1246 = vmatprep.subr.mxu0 0.0
  %1247 = vmatpush1.msra.mxu0 %v1175
  %1248 = vmatprep.subr.mxu0 0.0
  %1249 = vmatpush1.msra.mxu0 %v1174
  %1250 = vmatprep.subr.mxu0 0.0
  %1251 = vmatpush2.msra.mxu0 0.0
  %1252 = vmatprep.subr.mxu0 0.0
  %1253 = vmatpush2.msra.mxu0 0.0
  %1254 = vmatprep.subr.mxu0 0.0
  %1255 = vmatpush2.msra.mxu0 0.0
  %1256 = vmatprep.subr.mxu0 0.0
  %1257 = vmatpush2.msra.mxu0 0.0
  %1258 = vmatprep.subr.mxu0 0.0
  %1259 = vmatpush2.msra.mxu0 0.0
  %1260 = vmatprep.subr.mxu0 0.0
  %1261 = vmatpush2.msra.mxu0 0.0
  %1262 = vmatprep.subr.mxu0 0.0
  %1263 = vmatpush2.msra.mxu0 0.0
  %1264 = vmatprep.subr.mxu0 0.0
  %1265 = vmatpush2.msra.mxu0 0.0
  %1266 = vmatprep.subr.mxu0 0.0
  %1267 = vmatpush2.msra.mxu0 0.0
  %1268 = vmatprep.subr.mxu0 0.0
  %1269 = vmatpush2.msra.mxu0 0.0
  %1270 = vmatprep.subr.mxu0 0.0
  %1271 = vmatpush2.msra.mxu0 0.0
  %1272 = vmatprep.subr.mxu0 0.0
  %1273 = vmatpush2.msra.mxu0 0.0
  %1274 = vmatprep.subr.mxu0 0.0
  %1275 = vmatpush2.msra.mxu0 0.0
  %1276 = vmatprep.subr.mxu0 0.0
  %1277 = vmatpush2.msra.mxu0 0.0
  %1278 = vmatprep.subr.mxu0 0.0
  %1279 = vmatpush2.msra.mxu0 0.0
  %1280 = vmatprep.subr.mxu0 0.0
  %1281 = vmatpush2.msra.mxu0 0.0
  %1282 = vmatprep.mubr.f32.mxu0 0.0
  %1283 = vmatmul.mubr.f32.gmra.mxu0 %v1207
  %v1284 = vpop.f32.mrf.mxu0
  %v1285 = vadd.f32 %v1189, %v1284
  %v1286 = vpop.f32.mrf.mxu0
  %1287 = vmatprep.mubr.f32.mxu0 0.0
  %1288 = vmatmul.mubr.f32.gmra.mxu0 %v1210
  %v1289 = vpop.f32.mrf.mxu0
  %v1290 = vadd.f32 %v1194, %v1289
  %v1291 = vpop.f32.mrf.mxu0
  %1292 = vmatprep.mubr.f32.mxu0 0.0
  %1293 = vmatmul.mubr.f32.gmra.mxu0 %v1213
  %v1294 = vpop.f32.mrf.mxu0
  %v1295 = vadd.f32 %v1199, %v1294
  %v1296 = vpop.f32.mrf.mxu0
  %1297 = vmatprep.mubr.f32.mxu0 0.0
  %1298 = vmatmul.mubr.f32.gmra.mxu0 %v1216
  %v1299 = vpop.f32.mrf.mxu0
  %v1300 = vadd.f32 %v1204, %v1299
  %v1301 = vpop.f32.mrf.mxu0
  %1302 = vdwg.mxu0
  %v1303 = vld [vmem:[%s2 + $0x98] sm:$0xff]
  %v1304 = vld [vmem:[%s2 + $0xa0] sm:$0xff]
  %v1305 = vld [vmem:[%s2 + $0xa8] sm:$0xff]
  %v1306 = vld [vmem:[%s2 + $0xb0] sm:$0xff]
  %v1307 = vld [vmem:[%s3 + $0x98] sm:$0xff]
  %v1308 = vld [vmem:[%s3 + $0xa0] sm:$0xff]
  %v1309 = vld [vmem:[%s3 + $0xa8] sm:$0xff]
  %v1310 = vld [vmem:[%s3 + $0xb0] sm:$0xff]
  %1312 = vset.pattern.permute.xlu0 0
  %1313 = vperm.xlu0 %1312, %v1307
  %v1314 = vpop.permute.xlu0 %1313
  %1317 = vset.pattern.permute.xlu0 0
  %1318 = vperm.xlu0 %1317, %v1308
  %v1319 = vpop.permute.xlu0 %1318
  %1322 = vset.pattern.permute.xlu0 0
  %1323 = vperm.xlu0 %1322, %v1309
  %v1324 = vpop.permute.xlu0 %1323
  %1327 = vset.pattern.permute.xlu0 0
  %1328 = vperm.xlu0 %1327, %v1310
  %v1329 = vpop.permute.xlu0 %1328
  %v1332 = vsel %vm377, %v1303, 0
  %v1335 = vsel %vm377, %v1304, 0
  %v1338 = vsel %vm377, %v1305, 0
  %v1341 = vsel %vm377, %v1306, 0
  %1343 = vmatprep.subr.mxu0 0.0
  %1344 = vmatpush1.msra.mxu0 0.0
  %1345 = vmatprep.subr.mxu0 0.0
  %1346 = vmatpush1.msra.mxu0 0.0
  %1347 = vmatprep.subr.mxu0 0.0
  %1348 = vmatpush1.msra.mxu0 0.0
  %1349 = vmatprep.subr.mxu0 0.0
  %1350 = vmatpush1.msra.mxu0 0.0
  %1351 = vmatprep.subr.mxu0 0.0
  %1352 = vmatpush1.msra.mxu0 0.0
  %1353 = vmatprep.subr.mxu0 0.0
  %1354 = vmatpush1.msra.mxu0 0.0
  %1355 = vmatprep.subr.mxu0 0.0
  %1356 = vmatpush1.msra.mxu0 0.0
  %1357 = vmatprep.subr.mxu0 0.0
  %1358 = vmatpush1.msra.mxu0 0.0
  %1359 = vmatprep.subr.mxu0 0.0
  %1360 = vmatpush1.msra.mxu0 0.0
  %1361 = vmatprep.subr.mxu0 0.0
  %1362 = vmatpush1.msra.mxu0 0.0
  %1363 = vmatprep.subr.mxu0 0.0
  %1364 = vmatpush1.msra.mxu0 0.0
  %1365 = vmatprep.subr.mxu0 0.0
  %1366 = vmatpush1.msra.mxu0 0.0
  %1367 = vmatprep.subr.mxu0 0.0
  %1368 = vmatpush1.msra.mxu0 %v1300
  %1369 = vmatprep.subr.mxu0 0.0
  %1370 = vmatpush1.msra.mxu0 %v1295
  %1371 = vmatprep.subr.mxu0 0.0
  %1372 = vmatpush1.msra.mxu0 %v1290
  %1373 = vmatprep.subr.mxu0 0.0
  %1374 = vmatpush1.msra.mxu0 %v1285
  %1375 = vmatprep.subr.mxu0 0.0
  %1376 = vmatpush2.msra.mxu0 0.0
  %1377 = vmatprep.subr.mxu0 0.0
  %1378 = vmatpush2.msra.mxu0 0.0
  %1379 = vmatprep.subr.mxu0 0.0
  %1380 = vmatpush2.msra.mxu0 0.0
  %1381 = vmatprep.subr.mxu0 0.0
  %1382 = vmatpush2.msra.mxu0 0.0
  %1383 = vmatprep.subr.mxu0 0.0
  %1384 = vmatpush2.msra.mxu0 0.0
  %1385 = vmatprep.subr.mxu0 0.0
  %1386 = vmatpush2.msra.mxu0 0.0
  %1387 = vmatprep.subr.mxu0 0.0
  %1388 = vmatpush2.msra.mxu0 0.0
  %1389 = vmatprep.subr.mxu0 0.0
  %1390 = vmatpush2.msra.mxu0 0.0
  %1391 = vmatprep.subr.mxu0 0.0
  %1392 = vmatpush2.msra.mxu0 0.0
  %1393 = vmatprep.subr.mxu0 0.0
  %1394 = vmatpush2.msra.mxu0 0.0
  %1395 = vmatprep.subr.mxu0 0.0
  %1396 = vmatpush2.msra.mxu0 0.0
  %1397 = vmatprep.subr.mxu0 0.0
  %1398 = vmatpush2.msra.mxu0 0.0
  %1399 = vmatprep.subr.mxu0 0.0
  %1400 = vmatpush2.msra.mxu0 0.0
  %1401 = vmatprep.subr.mxu0 0.0
  %1402 = vmatpush2.msra.mxu0 0.0
  %1403 = vmatprep.subr.mxu0 0.0
  %1404 = vmatpush2.msra.mxu0 0.0
  %1405 = vmatprep.subr.mxu0 0.0
  %1406 = vmatpush2.msra.mxu0 0.0
  %1407 = vmatprep.mubr.f32.mxu0 0.0
  %1408 = vmatmul.mubr.f32.gmra.mxu0 %v1332
  %v1409 = vpop.f32.mrf.mxu0
  %v1410 = vadd.f32 %v1314, %v1409
  %v1411 = vpop.f32.mrf.mxu0
  %1412 = vmatprep.mubr.f32.mxu0 0.0
  %1413 = vmatmul.mubr.f32.gmra.mxu0 %v1335
  %v1414 = vpop.f32.mrf.mxu0
  %v1415 = vadd.f32 %v1319, %v1414
  %v1416 = vpop.f32.mrf.mxu0
  %1417 = vmatprep.mubr.f32.mxu0 0.0
  %1418 = vmatmul.mubr.f32.gmra.mxu0 %v1338
  %v1419 = vpop.f32.mrf.mxu0
  %v1420 = vadd.f32 %v1324, %v1419
  %v1421 = vpop.f32.mrf.mxu0
  %1422 = vmatprep.mubr.f32.mxu0 0.0
  %1423 = vmatmul.mubr.f32.gmra.mxu0 %v1341
  %v1424 = vpop.f32.mrf.mxu0
  %v1425 = vadd.f32 %v1329, %v1424
  %v1426 = vpop.f32.mrf.mxu0
  %1427 = vdwg.mxu0
  %v1428 = vld [vmem:[%s1] sm:$0xff]
  %v1429 = vld [vmem:[%s2 + $0xb8] sm:$0xff]
  %v1430 = vld [vmem:[%s2 + $0xc0] sm:$0xff]
  %v1431 = vld [vmem:[%s2 + $0xc8] sm:$0xff]
  %v1432 = vld [vmem:[%s2 + $0xd0] sm:$0xff]
  %v1433 = vld [vmem:[%s3 + $0xb8] sm:$0xff]
  %v1434 = vld [vmem:[%s3 + $0xc0] sm:$0xff]
  %v1435 = vld [vmem:[%s3 + $0xc8] sm:$0xff]
  %v1436 = vld [vmem:[%s3 + $0xd0] sm:$0xff]
  %1438 = vset.pattern.permute.xlu0 0
  %1439 = vperm.xlu0 %1438, %v1433
  %v1440 = vpop.permute.xlu0 %1439
  %1443 = vset.pattern.permute.xlu0 0
  %1444 = vperm.xlu0 %1443, %v1434
  %v1445 = vpop.permute.xlu0 %1444
  %1448 = vset.pattern.permute.xlu0 0
  %1449 = vperm.xlu0 %1448, %v1435
  %v1450 = vpop.permute.xlu0 %1449
  %1453 = vset.pattern.permute.xlu0 0
  %1454 = vperm.xlu0 %1453, %v1436
  %v1455 = vpop.permute.xlu0 %1454
  %v1458 = vsel %vm123, %v1429, 0
  %v1461 = vsel %vm123, %v1430, 0
  %v1464 = vsel %vm123, %v1431, 0
  %v1467 = vsel %vm123, %v1432, 0
  %1469 = vmatprep.subr.mxu0 0.0
  %1470 = vmatpush1.msra.mxu0 0.0
  %1471 = vmatprep.subr.mxu0 0.0
  %1472 = vmatpush1.msra.mxu0 0.0
  %1473 = vmatprep.subr.mxu0 0.0
  %1474 = vmatpush1.msra.mxu0 0.0
  %1475 = vmatprep.subr.mxu0 0.0
  %1476 = vmatpush1.msra.mxu0 0.0
  %1477 = vmatprep.subr.mxu0 0.0
  %1478 = vmatpush1.msra.mxu0 0.0
  %1479 = vmatprep.subr.mxu0 0.0
  %1480 = vmatpush1.msra.mxu0 0.0
  %1481 = vmatprep.subr.mxu0 0.0
  %1482 = vmatpush1.msra.mxu0 0.0
  %1483 = vmatprep.subr.mxu0 0.0
  %1484 = vmatpush1.msra.mxu0 0.0
  %1485 = vmatprep.subr.mxu0 0.0
  %1486 = vmatpush1.msra.mxu0 0.0
  %1487 = vmatprep.subr.mxu0 0.0
  %1488 = vmatpush1.msra.mxu0 0.0
  %1489 = vmatprep.subr.mxu0 0.0
  %1490 = vmatpush1.msra.mxu0 0.0
  %1491 = vmatprep.subr.mxu0 0.0
  %1492 = vmatpush1.msra.mxu0 0.0
  %1493 = vmatprep.subr.mxu0 0.0
  %1494 = vmatpush1.msra.mxu0 0.0
  %1495 = vmatprep.subr.mxu0 0.0
  %1496 = vmatpush1.msra.mxu0 0.0
  %1497 = vmatprep.subr.mxu0 0.0
  %1498 = vmatpush1.msra.mxu0 0.0
  %1499 = vmatprep.subr.mxu0 0.0
  %1500 = vmatpush1.msra.mxu0 %v1428
  %1501 = vmatprep.subr.mxu0 0.0
  %1502 = vmatpush2.msra.mxu0 0.0
  %1503 = vmatprep.subr.mxu0 0.0
  %1504 = vmatpush2.msra.mxu0 0.0
  %1505 = vmatprep.subr.mxu0 0.0
  %1506 = vmatpush2.msra.mxu0 0.0
  %1507 = vmatprep.subr.mxu0 0.0
  %1508 = vmatpush2.msra.mxu0 0.0
  %1509 = vmatprep.subr.mxu0 0.0
  %1510 = vmatpush2.msra.mxu0 0.0
  %1511 = vmatprep.subr.mxu0 0.0
  %1512 = vmatpush2.msra.mxu0 0.0
  %1513 = vmatprep.subr.mxu0 0.0
  %1514 = vmatpush2.msra.mxu0 0.0
  %1515 = vmatprep.subr.mxu0 0.0
  %1516 = vmatpush2.msra.mxu0 0.0
  %1517 = vmatprep.subr.mxu0 0.0
  %1518 = vmatpush2.msra.mxu0 0.0
  %1519 = vmatprep.subr.mxu0 0.0
  %1520 = vmatpush2.msra.mxu0 0.0
  %1521 = vmatprep.subr.mxu0 0.0
  %1522 = vmatpush2.msra.mxu0 0.0
  %1523 = vmatprep.subr.mxu0 0.0
  %1524 = vmatpush2.msra.mxu0 0.0
  %1525 = vmatprep.subr.mxu0 0.0
  %1526 = vmatpush2.msra.mxu0 0.0
  %1527 = vmatprep.subr.mxu0 0.0
  %1528 = vmatpush2.msra.mxu0 0.0
  %1529 = vmatprep.subr.mxu0 0.0
  %1530 = vmatpush2.msra.mxu0 0.0
  %1531 = vmatprep.subr.mxu0 0.0
  %1532 = vmatpush2.msra.mxu0 0.0
  %1533 = vmatprep.mubr.f32.mxu0 0.0
  %1534 = vmatmul.mubr.f32.gmra.mxu0 %v1458
  %v1535 = vpop.f32.mrf.mxu0
  %v1536 = vadd.f32 %v1440, %v1535
  %v1537 = vpop.f32.mrf.mxu0
  %1538 = vmatprep.mubr.f32.mxu0 0.0
  %1539 = vmatmul.mubr.f32.gmra.mxu0 %v1461
  %v1540 = vpop.f32.mrf.mxu0
  %v1541 = vadd.f32 %v1445, %v1540
  %v1542 = vpop.f32.mrf.mxu0
  %1543 = vmatprep.mubr.f32.mxu0 0.0
  %1544 = vmatmul.mubr.f32.gmra.mxu0 %v1464
  %v1545 = vpop.f32.mrf.mxu0
  %v1546 = vadd.f32 %v1450, %v1545
  %v1547 = vpop.f32.mrf.mxu0
  %1548 = vmatprep.mubr.f32.mxu0 0.0
  %1549 = vmatmul.mubr.f32.gmra.mxu0 %v1467
  %v1550 = vpop.f32.mrf.mxu0
  %v1551 = vadd.f32 %v1455, %v1550
  %v1552 = vpop.f32.mrf.mxu0
  %1553 = vdwg.mxu0
  %v1554 = vadd.f32 %v1410, %v1536
  %v1555 = vadd.f32 %v1415, %v1541
  %v1556 = vadd.f32 %v1420, %v1546
  %v1557 = vadd.f32 %v1425, %v1551
  %v1558 = vmax.f32 %v1554, 0.0
  %v1559 = vmax.f32 %v1555, 0.0
  %v1560 = vmax.f32 %v1556, 0.0
  %v1561 = vmax.f32 %v1557, 0.0
  %v1562 = vld [vmem:[%s2 + $0xd8] sm:$0xff]
  %v1563 = vld [vmem:[%s2 + $0xe0] sm:$0xff]
  %v1564 = vld [vmem:[%s2 + $0xe8] sm:$0xff]
  %v1565 = vld [vmem:[%s2 + $0xf0] sm:$0xff]
  %v1566 = vld [vmem:[%s3 + $0xd8] sm:$0xff]
  %v1567 = vld [vmem:[%s3 + $0xe0] sm:$0xff]
  %v1568 = vld [vmem:[%s3 + $0xe8] sm:$0xff]
  %v1569 = vld [vmem:[%s3 + $0xf0] sm:$0xff]
  %1571 = vset.pattern.permute.xlu0 0
  %1572 = vperm.xlu0 %1571, %v1566
  %v1573 = vpop.permute.xlu0 %1572
  %1576 = vset.pattern.permute.xlu0 0
  %1577 = vperm.xlu0 %1576, %v1567
  %v1578 = vpop.permute.xlu0 %1577
  %1581 = vset.pattern.permute.xlu0 0
  %1582 = vperm.xlu0 %1581, %v1568
  %v1583 = vpop.permute.xlu0 %1582
  %1586 = vset.pattern.permute.xlu0 0
  %1587 = vperm.xlu0 %1586, %v1569
  %v1588 = vpop.permute.xlu0 %1587
  %v1591 = vsel %vm377, %v1562, 0
  %v1594 = vsel %vm377, %v1563, 0
  %v1597 = vsel %vm377, %v1564, 0
  %v1600 = vsel %vm377, %v1565, 0
  %1602 = vmatprep.subr.mxu0 0.0
  %1603 = vmatpush1.msra.mxu0 0.0
  %1604 = vmatprep.subr.mxu0 0.0
  %1605 = vmatpush1.msra.mxu0 0.0
  %1606 = vmatprep.subr.mxu0 0.0
  %1607 = vmatpush1.msra.mxu0 0.0
  %1608 = vmatprep.subr.mxu0 0.0
  %1609 = vmatpush1.msra.mxu0 0.0
  %1610 = vmatprep.subr.mxu0 0.0
  %1611 = vmatpush1.msra.mxu0 0.0
  %1612 = vmatprep.subr.mxu0 0.0
  %1613 = vmatpush1.msra.mxu0 0.0
  %1614 = vmatprep.subr.mxu0 0.0
  %1615 = vmatpush1.msra.mxu0 0.0
  %1616 = vmatprep.subr.mxu0 0.0
  %1617 = vmatpush1.msra.mxu0 0.0
  %1618 = vmatprep.subr.mxu0 0.0
  %1619 = vmatpush1.msra.mxu0 0.0
  %1620 = vmatprep.subr.mxu0 0.0
  %1621 = vmatpush1.msra.mxu0 0.0
  %1622 = vmatprep.subr.mxu0 0.0
  %1623 = vmatpush1.msra.mxu0 0.0
  %1624 = vmatprep.subr.mxu0 0.0
  %1625 = vmatpush1.msra.mxu0 0.0
  %1626 = vmatprep.subr.mxu0 0.0
  %1627 = vmatpush1.msra.mxu0 %v1561
  %1628 = vmatprep.subr.mxu0 0.0
  %1629 = vmatpush1.msra.mxu0 %v1560
  %1630 = vmatprep.subr.mxu0 0.0
  %1631 = vmatpush1.msra.mxu0 %v1559
  %1632 = vmatprep.subr.mxu0 0.0
  %1633 = vmatpush1.msra.mxu0 %v1558
  %1634 = vmatprep.subr.mxu0 0.0
  %1635 = vmatpush2.msra.mxu0 0.0
  %1636 = vmatprep.subr.mxu0 0.0
  %1637 = vmatpush2.msra.mxu0 0.0
  %1638 = vmatprep.subr.mxu0 0.0
  %1639 = vmatpush2.msra.mxu0 0.0
  %1640 = vmatprep.subr.mxu0 0.0
  %1641 = vmatpush2.msra.mxu0 0.0
  %1642 = vmatprep.subr.mxu0 0.0
  %1643 = vmatpush2.msra.mxu0 0.0
  %1644 = vmatprep.subr.mxu0 0.0
  %1645 = vmatpush2.msra.mxu0 0.0
  %1646 = vmatprep.subr.mxu0 0.0
  %1647 = vmatpush2.msra.mxu0 0.0
  %1648 = vmatprep.subr.mxu0 0.0
  %1649 = vmatpush2.msra.mxu0 0.0
  %1650 = vmatprep.subr.mxu0 0.0
  %1651 = vmatpush2.msra.mxu0 0.0
  %1652 = vmatprep.subr.mxu0 0.0
  %1653 = vmatpush2.msra.mxu0 0.0
  %1654 = vmatprep.subr.mxu0 0.0
  %1655 = vmatpush2.msra.mxu0 0.0
  %1656 = vmatprep.subr.mxu0 0.0
  %1657 = vmatpush2.msra.mxu0 0.0
  %1658 = vmatprep.subr.mxu0 0.0
  %1659 = vmatpush2.msra.mxu0 0.0
  %1660 = vmatprep.subr.mxu0 0.0
  %1661 = vmatpush2.msra.mxu0 0.0
  %1662 = vmatprep.subr.mxu0 0.0
  %1663 = vmatpush2.msra.mxu0 0.0
  %1664 = vmatprep.subr.mxu0 0.0
  %1665 = vmatpush2.msra.mxu0 0.0
  %1666 = vmatprep.mubr.f32.mxu0 0.0
  %1667 = vmatmul.mubr.f32.gmra.mxu0 %v1591
  %v1668 = vpop.f32.mrf.mxu0
  %v1669 = vadd.f32 %v1573, %v1668
  %v1670 = vpop.f32.mrf.mxu0
  %1671 = vmatprep.mubr.f32.mxu0 0.0
  %1672 = vmatmul.mubr.f32.gmra.mxu0 %v1594
  %v1673 = vpop.f32.mrf.mxu0
  %v1674 = vadd.f32 %v1578, %v1673
  %v1675 = vpop.f32.mrf.mxu0
  %1676 = vmatprep.mubr.f32.mxu0 0.0
  %1677 = vmatmul.mubr.f32.gmra.mxu0 %v1597
  %v1678 = vpop.f32.mrf.mxu0
  %v1679 = vadd.f32 %v1583, %v1678
  %v1680 = vpop.f32.mrf.mxu0
  %1681 = vmatprep.mubr.f32.mxu0 0.0
  %1682 = vmatmul.mubr.f32.gmra.mxu0 %v1600
  %v1683 = vpop.f32.mrf.mxu0
  %v1684 = vadd.f32 %v1588, %v1683
  %v1685 = vpop.f32.mrf.mxu0
  %1686 = vdwg.mxu0
  %vm1687 = vcmask 15360
  %1688 = vst.msk [vmem:[%s4] sm:$0xff] %vm1687, %v1669
  %1689 = vst.msk [vmem:[%s4 + $0x8] sm:$0xff] %vm1687, %v1674
  %1690 = vst.msk [vmem:[%s4 + $0x10] sm:$0xff] %vm1687, %v1679
  %1691 = vst.msk [vmem:[%s4 + $0x18] sm:$0xff] %vm1687, %v1684
  // Predicated region
  $region18: #{_forward_jit.1} parent=0 // pred_check
    _
  $region19: #{_forward_jit.1} parent=0 // pred_check_branch
    %1693 = sbr.rel (0) target = $region21
  $region20: #{_forward_jit.1} parent=0 // pred_region
    _
  $region21: #{_forward_jit.1} parent=0 // pred_fallthru
    _
  // Predicated region
  $region22: #{_forward_jit.1} parent=0 // pred_check
    _
  $region23: #{_forward_jit.1} parent=0 // pred_check_branch
    %1695 = sbr.rel (0) target = $region25
  $region24: #{_forward_jit.1} parent=0 // pred_region
    _
  $region25: #{_forward_jit.1} parent=0 // pred_fallthru
    _

</llo_original>
